<compile_context>
chip_gen: v6e
topology: v6e:2x2x1
jax: 0.10.0
libtpu: 0.0.40
codegen_flags: <defaults>
</compile_context>

<pallas_src>
import functools

import jax
import jax.numpy as jnp
from jax.experimental import pallas as pl
from jax.experimental.pallas import tpu as pltpu


def _conv_bn_act_kernel(x_ref, w_ref, shift_ref, o_ref, acc_ref, *,
                        KH, KW, stride, tHo, Wo, Cin_g, Cout_g, groups,
                        has_act):
    """One (image, output-row-strip) per grid step.

    x_ref:     [1, tH_in, Wp, Cin]       haloed NHWC input strip
    w_ref:     [KH*KW*Cin_g, Cout_pad]   im2col weights (BN scale pre-folded)
    shift_ref: [1, Cout_pad]             folded BN shift (or conv bias), f32
    o_ref:     [1, tHo*Wo, Cout_pad]     lane-dense output slab
    acc_ref:   [tHo*Wo, Cout_pad] f32    scratch (grouped-conv path only)
    """
    x = x_ref[0]                              # [tH_in, Wp, Cin]
    w = w_ref[...]                            # [Kg, Cout_pad]
    shift = shift_ref[...]                    # [1, Cout_pad]
    M = tHo * Wo

    def im2col(xg):
        # xg: [tH_in, Wp, Cin_g] -> [M, KH*KW*Cin_g]; K ordering (kh, kw, cin)
        # matches the wrapper-side weight reshape.
        # TODO(synk): for stride > 1 the strided W slice is an XLU relayout;
        # a wrapper-side stride x stride phase split would remove it.
        cols = []
        for kh in range(KH):
            for kw in range(KW):
                p = xg[kh: kh + (tHo - 1) * stride + 1: stride,
                       kw: kw + (Wo - 1) * stride + 1: stride, :]
                cols.append(p.reshape(M, Cin_g))
        return jnp.concatenate(cols, axis=-1)

    if groups == 1:
        # Single big-K matmul; accumulate in f32 without up-casting operands.
        y = jnp.dot(im2col(x), w, preferred_element_type=jnp.float32)
    else:
        # Grouped conv: write each group's result straight into its output
        # channel slice of the f32 scratch (no lane-axis concatenation).
        acc_ref[...] = jnp.zeros_like(acc_ref)
        for g in range(groups):
            xg = x[:, :, g * Cin_g:(g + 1) * Cin_g]
            wg = w[:, g * Cout_g:(g + 1) * Cout_g]
            acc_ref[:, g * Cout_g:(g + 1) * Cout_g] = jnp.dot(
                im2col(xg), wg, preferred_element_type=jnp.float32)
        y = acc_ref[...]

    y = y + shift                             # folded BN shift / conv bias
    if has_act:
        y = jnp.maximum(y, 0.0)               # ReLU
    o_ref[0] = y.astype(o_ref.dtype)          # unmasked, lane-dense store


def _vmem_capacity_bytes():
    try:
        return int(getattr(pltpu.get_tpu_info(), "vmem_capacity_bytes",
                           64 << 20))
    except Exception:
        return 64 << 20


def _pick_tile_height(Ho, Wo, Wp, Cin, Cout_pad, stride, KH, itemsize,
                      budget_bytes):
    """Largest tHo dividing Ho whose double-buffered tiles fit the budget."""
    for tHo in range(Ho, 0, -1):
        if Ho % tHo:
            continue
        tH_in = (tHo - 1) * stride + KH
        need = (2 * tH_in * Wp * Cin * itemsize        # haloed input strip x2
                + 2 * tHo * Wo * Cout_pad * itemsize   # output tile x2
                + tHo * Wo * Cout_pad * 4)             # f32 scratch acc
        if need <= budget_bytes:
            return tHo
    return 1


def conv_bn_act_block(x_nchw, weight_oihw, conv_bias, bn_gamma, bn_beta,
                      bn_mean, bn_var, *, stride, padding, groups=1,
                      has_bn=True, has_act=True, eps=1e-5):
    """Forward pass equivalent to ConvBnActBlock(...)(x) (eval-mode BN)."""
    N, Cin, H, W = x_nchw.shape
    Cout, Cin_g, KH, KW = weight_oihw.shape
    assert Cin_g * groups == Cin and Cout % groups == 0
    Cout_g = Cout // groups
    dtype = x_nchw.dtype

    # ---- plain-JAX glue: layout, spatial padding, BN folding ----
    x_nhwc = jnp.transpose(x_nchw, (0, 2, 3, 1))
    x_pad = jnp.pad(x_nhwc, ((0, 0), (padding, padding),
                             (padding, padding), (0, 0)))
    Hp, Wp = H + 2 * padding, W + 2 * padding
    Ho = (Hp - KH) // stride + 1
    Wo = (Wp - KW) // stride + 1

    if has_bn:
        scale = bn_gamma / jnp.sqrt(bn_var + eps)            # [Cout]
        shift = bn_beta - bn_mean * scale
        w_folded = weight_oihw * scale[:, None, None, None]  # fold scale into W
    else:
        w_folded = weight_oihw
        shift = (conv_bias if conv_bias is not None
                 else jnp.zeros((Cout,), jnp.float32))
        # NOTE: conv_bias is ignored when has_bn=True (matches Conv2d(bias=False)+BN).

    # OIHW -> [KH*KW*Cin_g, Cout]; zero-pad Cout to a lane-dense multiple of 128.
    Kg = KH * KW * Cin_g
    Cout_pad = ((Cout + 127) // 128) * 128
    w_mat = jnp.transpose(w_folded, (2, 3, 1, 0)).reshape(Kg, Cout)
    w_mat = jnp.pad(w_mat, ((0, 0), (0, Cout_pad - Cout))).astype(dtype)
    shift_p = jnp.pad(shift.astype(jnp.float32),
                      (0, Cout_pad - Cout)).reshape(1, Cout_pad)

    # ---- generation-aware spatial tiling over output rows (haloed strips) ----
    vmem_cap = _vmem_capacity_bytes()
    vmem_limit = max(32 << 20, min(64 << 20, vmem_cap - (16 << 20)))
    itemsize = jnp.dtype(dtype).itemsize
    tHo = _pick_tile_height(Ho, Wo, Wp, Cin, Cout_pad, stride, KH, itemsize,
                            budget_bytes=(2 * vmem_limit) // 3)
    num_t = Ho // tHo
    tH_in = (tHo - 1) * stride + KH

    # Overlapping (haloed) row strips, built with static slices in the wrapper.
    strips = [x_pad[:, t * tHo * stride: t * tHo * stride + tH_in]
              for t in range(num_t)]
    x_strips = jnp.stack(strips, axis=1).reshape(N * num_t, tH_in, Wp, Cin)

    kernel = functools.partial(
        _conv_bn_act_kernel, KH=KH, KW=KW, stride=stride, tHo=tHo, Wo=Wo,
        Cin_g=Cin_g, Cout_g=Cout_g, groups=groups, has_act=has_act)

    out = pl.pallas_call(
        kernel,
        out_shape=jax.ShapeDtypeStruct((N * num_t, tHo * Wo, Cout_pad), dtype),
        grid_spec=pltpu.PrefetchScalarGridSpec(
            num_scalar_prefetch=0,
            grid=(N * num_t,),
            in_specs=[
                pl.BlockSpec((1, tH_in, Wp, Cin), lambda b: (b, 0, 0, 0)),
                pl.BlockSpec((Kg, Cout_pad), lambda b: (0, 0)),
                pl.BlockSpec((1, Cout_pad), lambda b: (0, 0)),
            ],
            out_specs=pl.BlockSpec((1, tHo * Wo, Cout_pad),
                                   lambda b: (b, 0, 0)),
            scratch_shapes=[pltpu.VMEM((tHo * Wo, Cout_pad), jnp.float32)],
        ),
        compiler_params=pltpu.CompilerParams(
            dimension_semantics=("parallel",),
            vmem_limit_bytes=int(vmem_limit)),
    )(x_strips, w_mat, shift_p)

    # Back to NCHW, drop the lane padding on the channel axis.
    out = out.reshape(N, Ho, Wo, Cout_pad)[:, :, :, :Cout]
    return jnp.transpose(out, (0, 3, 1, 2))


def _reference(x_nchw, weight_oihw, bn_gamma, bn_beta, bn_mean, bn_var, *,
               stride, padding, groups, eps=1e-5):
    y = jax.lax.conv_general_dilated(
        x_nchw.astype(jnp.float32), weight_oihw.astype(jnp.float32),
        window_strides=(stride, stride),
        padding=((padding, padding), (padding, padding)),
        dimension_numbers=("NCHW", "OIHW", "NCHW"),
        feature_group_count=groups)
    scale = (bn_gamma / jnp.sqrt(bn_var + eps)).reshape(1, -1, 1, 1)
    shift = (bn_beta - bn_mean * bn_gamma / jnp.sqrt(bn_var + eps)).reshape(
        1, -1, 1, 1)
    return jnp.maximum(y * scale + shift, 0.0)


if __name__ == "__main__":
    # ConvBnActBlock(inplanes=4, planes=8, kernel_size=3, stride=1, padding=1,
    #                groups=1, has_bn=True, has_act=True)
    N, Cin, H, W = 2, 4, 16, 16
    Cout, KH, KW = 8, 3, 3
    stride, padding, groups = 1, 1, 1

    key = jax.random.PRNGKey(0)
    k_x, k_w, k_g, k_b, k_m, k_v = jax.random.split(key, 6)

    x = jax.random.normal(k_x, (N, Cin, H, W), jnp.float32)
    # deterministic synthetic parameters (no checkpoint load)
    weight = jax.random.normal(k_w, (Cout, Cin // groups, KH, KW),
                               jnp.float32) * 0.1
    bn_gamma = 0.5 + jax.random.uniform(k_g, (Cout,), jnp.float32)
    bn_beta = 0.1 * jax.random.normal(k_b, (Cout,), jnp.float32)
    bn_mean = 0.1 * jax.random.normal(k_m, (Cout,), jnp.float32)
    bn_var = 0.5 + jax.random.uniform(k_v, (Cout,), jnp.float32)

    out = conv_bn_act_block(
        x, weight, None, bn_gamma, bn_beta, bn_mean, bn_var,
        stride=stride, padding=padding, groups=groups,
        has_bn=True, has_act=True)
    out = jax.block_until_ready(out)

    ref = _reference(x, weight, bn_gamma, bn_beta, bn_mean, bn_var,
                     stride=stride, padding=padding, groups=groups)
    assert out.shape == (N, Cout, H, W)
    assert jnp.allclose(out, ref, atol=1e-4, rtol=1e-4), "mismatch vs reference"

    print("KERNEL_OK")
</pallas_src>

<mosaic_0001>
module attributes {stable_mosaic.version = 11 : i64} {
  func.func @_conv_bn_act_kernel(%arg0: i32, %arg1: memref<1x18x18x4xf32, #tpu.memory_space<vmem>>, %arg2: memref<36x128xf32, #tpu.memory_space<vmem>>, %arg3: memref<1x128xf32, #tpu.memory_space<vmem>>, %arg4: memref<1x256x128xf32, #tpu.memory_space<vmem>>, %arg5: memref<256x128xf32, #tpu.memory_space<vmem>>) attributes {dimension_semantics = [#tpu.dimension_semantics<parallel>], iteration_bounds = array<i64: 2>, scalar_prefetch = 0 : i64, scratch_operands = 1 : i64, tpu.core_type = #tpu.core_type<tc>, window_params = [{transform_indices = @transform_0, window_bounds = array<i64: 1, 18, 18, 4>}, {pipeline_mode = #tpu.pipeline_mode<synchronous>, transform_indices = @transform_1, window_bounds = array<i64: 36, 128>}, {pipeline_mode = #tpu.pipeline_mode<synchronous>, transform_indices = @transform_2, window_bounds = array<i64: 1, 128>}, {transform_indices = @transform_3, window_bounds = array<i64: 1, 256, 128>}]} {
    %c0 = arith.constant 0 : index
    %c0_0 = arith.constant 0 : index
    %c0_1 = arith.constant 0 : index
    %c0_2 = arith.constant 0 : index
    %0 = vector.load %arg1[%c0, %c0_0, %c0_1, %c0_2] : memref<1x18x18x4xf32, #tpu.memory_space<vmem>>, vector<1x18x18x4xf32>
    %1 = vector.shape_cast %0 : vector<1x18x18x4xf32> to vector<18x18x4xf32>
    %c0_3 = arith.constant 0 : index
    %c0_4 = arith.constant 0 : index
    %2 = vector.load %arg2[%c0_3, %c0_4] : memref<36x128xf32, #tpu.memory_space<vmem>>, vector<36x128xf32>
    %c0_5 = arith.constant 0 : index
    %c0_6 = arith.constant 0 : index
    %3 = vector.load %arg3[%c0_5, %c0_6] : memref<1x128xf32, #tpu.memory_space<vmem>>, vector<1x128xf32>
    %4 = vector.extract_strided_slice %1 {offsets = [0, 0, 0], sizes = [16, 16, 4], strides = [1, 1, 1]} : vector<18x18x4xf32> to vector<16x16x4xf32>
    %5 = vector.shape_cast %4 : vector<16x16x4xf32> to vector<256x4xf32>
    %6 = vector.extract_strided_slice %1 {offsets = [0, 1, 0], sizes = [16, 16, 4], strides = [1, 1, 1]} : vector<18x18x4xf32> to vector<16x16x4xf32>
    %7 = vector.shape_cast %6 : vector<16x16x4xf32> to vector<256x4xf32>
    %8 = vector.extract_strided_slice %1 {offsets = [0, 2, 0], sizes = [16, 16, 4], strides = [1, 1, 1]} : vector<18x18x4xf32> to vector<16x16x4xf32>
    %9 = vector.shape_cast %8 : vector<16x16x4xf32> to vector<256x4xf32>
    %10 = vector.extract_strided_slice %1 {offsets = [1, 0, 0], sizes = [16, 16, 4], strides = [1, 1, 1]} : vector<18x18x4xf32> to vector<16x16x4xf32>
    %11 = vector.shape_cast %10 : vector<16x16x4xf32> to vector<256x4xf32>
    %12 = vector.extract_strided_slice %1 {offsets = [1, 1, 0], sizes = [16, 16, 4], strides = [1, 1, 1]} : vector<18x18x4xf32> to vector<16x16x4xf32>
    %13 = vector.shape_cast %12 : vector<16x16x4xf32> to vector<256x4xf32>
    %14 = vector.extract_strided_slice %1 {offsets = [1, 2, 0], sizes = [16, 16, 4], strides = [1, 1, 1]} : vector<18x18x4xf32> to vector<16x16x4xf32>
    %15 = vector.shape_cast %14 : vector<16x16x4xf32> to vector<256x4xf32>
    %16 = vector.extract_strided_slice %1 {offsets = [2, 0, 0], sizes = [16, 16, 4], strides = [1, 1, 1]} : vector<18x18x4xf32> to vector<16x16x4xf32>
    %17 = vector.shape_cast %16 : vector<16x16x4xf32> to vector<256x4xf32>
    %18 = vector.extract_strided_slice %1 {offsets = [2, 1, 0], sizes = [16, 16, 4], strides = [1, 1, 1]} : vector<18x18x4xf32> to vector<16x16x4xf32>
    %19 = vector.shape_cast %18 : vector<16x16x4xf32> to vector<256x4xf32>
    %20 = vector.extract_strided_slice %1 {offsets = [2, 2, 0], sizes = [16, 16, 4], strides = [1, 1, 1]} : vector<18x18x4xf32> to vector<16x16x4xf32>
    %21 = vector.shape_cast %20 : vector<16x16x4xf32> to vector<256x4xf32>
    %22 = tpu.concatenate %5, %7, %9, %11, %13, %15, %17, %19, %21 in 1 : vector<256x4xf32>, vector<256x4xf32>, vector<256x4xf32>, vector<256x4xf32>, vector<256x4xf32>, vector<256x4xf32>, vector<256x4xf32>, vector<256x4xf32>, vector<256x4xf32> -> vector<256x36xf32>
    %cst = arith.constant dense<0.000000e+00> : vector<256x128xf32>
    %23 = tpu.matmul %22, %2, %cst {dimension_numbers = #tpu.dot_dimension_numbers<[1], [0], [0], [1], [0, 0, 1, 1], [], []>} : vector<256x36xf32>, vector<36x128xf32>, vector<256x128xf32> -> vector<256x128xf32>
    %24 = vector.broadcast %3 : vector<1x128xf32> to vector<256x128xf32>
    %25 = arith.addf %23, %24 : vector<256x128xf32>
    %cst_7 = arith.constant 0.000000e+00 : f32
    %26 = vector.broadcast %cst_7 : f32 to vector<256x128xf32>
    %27 = arith.maximumf %25, %26 : vector<256x128xf32>
    %c0_8 = arith.constant 0 : index
    %c0_9 = arith.constant 0 : index
    %c0_10 = arith.constant 0 : index
    %28 = vector.load %arg4[%c0_8, %c0_9, %c0_10] : memref<1x256x128xf32, #tpu.memory_space<vmem>>, vector<1x256x128xf32>
    %29 = vector.shape_cast %28 : vector<1x256x128xf32> to vector<256x128xf32>
    %30 = vector.shape_cast %27 : vector<256x128xf32> to vector<1x256x128xf32>
    tpu.vector_store %arg4[%c0_8, %c0_9, %c0_10], %30 {strides = array<i32>} : memref<1x256x128xf32, #tpu.memory_space<vmem>>, vector<1x256x128xf32>,
    return
  }
  func.func @transform_0(%arg0: i32) -> (i32, i32, i32, i32) {
    %c0_i32 = arith.constant 0 : i32
    %c0_i32_0 = arith.constant 0 : i32
    %c0_i32_1 = arith.constant 0 : i32
    %c0_i32_2 = arith.constant 0 : i32
    return %arg0, %c0_i32, %c0_i32_0, %c0_i32_1 : i32, i32, i32, i32
  }
  func.func @transform_1(%arg0: i32) -> (i32, i32) {
    %c0_i32 = arith.constant 0 : i32
    %c0_i32_0 = arith.constant 0 : i32
    %c0_i32_1 = arith.constant 0 : i32
    return %c0_i32, %c0_i32_0 : i32, i32
  }
  func.func @transform_2(%arg0: i32) -> (i32, i32) {
    %c0_i32 = arith.constant 0 : i32
    %c0_i32_0 = arith.constant 0 : i32
    %c0_i32_1 = arith.constant 0 : i32
    return %c0_i32, %c0_i32_0 : i32, i32
  }
  func.func @transform_3(%arg0: i32) -> (i32, i32, i32) {
    %c0_i32 = arith.constant 0 : i32
    %c0_i32_0 = arith.constant 0 : i32
    %c0_i32_1 = arith.constant 0 : i32
    return %arg0, %c0_i32, %c0_i32_0 : i32, i32, i32
  }
}

</mosaic_0001>

<llo_original>
// kernel: tpu_custom_call.1
$region0: #{tpu_custom_call.1}
  #allocation0 [shape = 'u32[]', space=smem, size = 0x4, offset = 0x4, fixed_abs, tag = 'smem constant byte address 0x4 - core index']
  #allocation1 [shape = 'u32[144,128]{1,0:T(1,128)}', space=vmem, size = 0x12000, scoped, tag = 'internal scratch']
  #allocation2 [shape = 'f32[256,128]{1,0:T(8,128)}', space=vmem, size = 0x20000, scoped, tag = 'scratch operand']
  %s0 = inlined_call_operand.vmem [shape: f32[2,18,18,4], index: 0, kind: input, shape index: {}]
  %s1 = inlined_call_operand.vmem [shape: f32[36,128], index: 1, kind: input, shape index: {}]
  %s2 = inlined_call_operand.vmem [shape: f32[1,128], index: 2, kind: input, shape index: {}]
  %s3 = inlined_call_operand.hbm [shape: f32[2,256,128], index: 3, kind: output, shape index: {}]
  %s4 = sld [smem:[#allocation0]]
  $region45: #{tpu_custom_call.1} parent=0
    _
  %s6 = ssub.s32 1, %s4
  %s7 = scalar_select 0, %s6, %s4
  $region1: #{tpu_custom_call.1} parent=0
    #allocation3 [shape = 'u8[262144]{0}', space=vmem, size = 0x40000, scoped, tag = 'output window, operand 0']
    #allocation4 [shape = 's32[2]{0}', space=sflag, size = 0x8, scoped, tag = 'scoped memory for tpu_custom_call.1']
    %8 = vsyncpa [#allocation4], 0
    %s9 = scalar_lea.sflag [#allocation4], 1
    %10 = vsyncpa %s9, 0
    loop: start=0, step=1, limit=4
    $region2: #{tpu_custom_call.1} parent=1 // loop_pre_header
      _
    $region3: #{tpu_custom_call.1} parent=1 // loop_header
      %s12 = sphi 0, %s16
      %p13 = scmp.ge.s32.totalorder %s12, 4
      %s22 = sphi 0, %s24
      %s25 = sphi 0, %s22
      %s26 = sphi 0, %s25
      %s42 = sphi 0, %s26
      %s46 = sphi 0, %s46
      %s48 = sphi 0, %s46
      %s49 = sphi 0, %s48
      %s63 = sphi 0, %s49
      %s67 = sphi 0, %s67
      %s69 = sphi 0, %s67
      %s70 = sphi 0, %s69
      %s84 = sphi 0, %s70
      %s90 = sphi 0, %s92
      %s93 = sphi 0, %s90
      %s94 = sphi 0, %s93
      %s110 = sphi 0, %s94
    $region4: #{tpu_custom_call.1} parent=1 // loop_header_branch
      %15 = sbr.rel (%p13) target = $region8
    $region5: #{tpu_custom_call.1} parent=1 // loop_body
      %s17 = ssub.s32 %s12, 1
      %s18 = ssub.s32 %s12, 2
      %s19 = sadd.s32 %s12, 1
      %s20 = ssub.s32 %s12, %s19
      %p21 = scmp.eq.s32.totalorder %s20, 0
      %s23 = sadd.s32 %s22, 1
      %s24 = scalar_select %p21, %s22, %s23
      %p27 = pneg %p21
      %p28 = scmp.eq.s32.totalorder %s12, 1
      %p29 = por %p27, %p28
      %p30 = scmp.ne.s32.totalorder %s22, %s25
      %p31 = scmp.eq.s32.totalorder %s12, 0
      %p32 = por %p30, %p31
      %p33 = scmp.ne.s32.totalorder %s22, %s25
      %p34 = scmp.eq.s32.totalorder %s17, 1
      %p35 = por %p33, %p34
      %p36 = scmp.ne.s32.totalorder %s25, %s26
      %p37 = scmp.eq.s32.totalorder %s17, 0
      %p38 = por %p36, %p37
      %p39 = scmp.ne.s32.totalorder %s25, %s26
      %p40 = scmp.eq.s32.totalorder %s18, 1
      %p41 = por %p39, %p40
      %p43 = scmp.ne.s32.totalorder %s26, %s42
      %p44 = scmp.eq.s32.totalorder %s18, 0
      %p45 = por %p43, %p44
      %s47 = sadd.s32 %s46, 1
      %p50 = scmp.eq.s32.totalorder %s12, 1
      %p51 = scmp.ne.s32.totalorder %s46, %s48
      %p52 = scmp.eq.s32.totalorder %s12, 0
      %p53 = por %p51, %p52
      %p54 = scmp.ne.s32.totalorder %s46, %s48
      %p55 = scmp.eq.s32.totalorder %s17, 1
      %p56 = por %p54, %p55
      %p57 = scmp.ne.s32.totalorder %s48, %s49
      %p58 = scmp.eq.s32.totalorder %s17, 0
      %p59 = por %p57, %p58
      %p60 = scmp.ne.s32.totalorder %s48, %s49
      %p61 = scmp.eq.s32.totalorder %s18, 1
      %p62 = por %p60, %p61
      %p64 = scmp.ne.s32.totalorder %s49, %s63
      %p65 = scmp.eq.s32.totalorder %s18, 0
      %p66 = por %p64, %p65
      %s68 = sadd.s32 %s67, 1
      %p71 = scmp.eq.s32.totalorder %s12, 1
      %p72 = scmp.ne.s32.totalorder %s67, %s69
      %p73 = scmp.eq.s32.totalorder %s12, 0
      %p74 = por %p72, %p73
      %p75 = scmp.ne.s32.totalorder %s67, %s69
      %p76 = scmp.eq.s32.totalorder %s17, 1
      %p77 = por %p75, %p76
      %p78 = scmp.ne.s32.totalorder %s69, %s70
      %p79 = scmp.eq.s32.totalorder %s17, 0
      %p80 = por %p78, %p79
      %p81 = scmp.ne.s32.totalorder %s69, %s70
      %p82 = scmp.eq.s32.totalorder %s18, 1
      %p83 = por %p81, %p82
      %p85 = scmp.ne.s32.totalorder %s70, %s84
      %p86 = scmp.eq.s32.totalorder %s18, 0
      %p87 = por %p85, %p86
      %s88 = ssub.s32 %s12, %s19
      %p89 = scmp.eq.s32.totalorder %s88, 0
      %s91 = sadd.s32 %s90, 1
      %s92 = scalar_select %p89, %s90, %s91
      %p95 = pneg %p89
      %p96 = scmp.eq.s32.totalorder %s12, 1
      %p97 = por %p95, %p96
      %p98 = scmp.ne.s32.totalorder %s90, %s93
      %p99 = scmp.eq.s32.totalorder %s12, 0
      %p100 = por %p98, %p99
      %p101 = scmp.ne.s32.totalorder %s90, %s93
      %p102 = scmp.eq.s32.totalorder %s17, 1
      %p103 = por %p101, %p102
      %p104 = scmp.ne.s32.totalorder %s93, %s94
      %p105 = scmp.eq.s32.totalorder %s17, 0
      %p106 = por %p104, %p105
      %p107 = scmp.ne.s32.totalorder %s93, %s94
      %p108 = scmp.eq.s32.totalorder %s18, 1
      %p109 = por %p107, %p108
      %p111 = scmp.ne.s32.totalorder %s94, %s110
      %p112 = scmp.eq.s32.totalorder %s18, 0
      %p113 = por %p111, %p112
      %p114 = scmp.le.s32.totalorder 1, %s12
      %p115 = scmp.lt.s32.totalorder %s12, 3
      %p116 = pnand %p114, %p115
      %p117 = pneg %p116
      // Predicated region
      $region9: #{tpu_custom_call.1} parent=5 // pred_check
        _
      $region10: #{tpu_custom_call.1} parent=5 // pred_check_branch
        %119 = sbr.rel (%p116) target = $region12
      $region11: #{tpu_custom_call.1} parent=5 // pred_region
        %s120 = ssub.s32 %s12, 1
        // Predicated region
        $region13: #{tpu_custom_call.1} parent=11 // pred_check
          %p121 = pneg %p59
        $region14: #{tpu_custom_call.1} parent=11 // pred_check_branch
          %123 = sbr.rel (%p121) target = $region16
        $region15: #{tpu_custom_call.1} parent=11 // pred_region
          _
        $region16: #{tpu_custom_call.1} parent=11 // pred_fallthru
          _
        // Predicated region
        $region17: #{tpu_custom_call.1} parent=11 // pred_check
          %p124 = pneg %p80
        $region18: #{tpu_custom_call.1} parent=11 // pred_check_branch
          %126 = sbr.rel (%p124) target = $region20
        $region19: #{tpu_custom_call.1} parent=11 // pred_region
          _
        $region20: #{tpu_custom_call.1} parent=11 // pred_fallthru
          _
      $region12: #{tpu_custom_call.1} parent=5 // pred_fallthru
        _
      %p127 = scmp.lt.s32.totalorder %s12, 2
      // Predicated region
      $region21: #{tpu_custom_call.1} parent=5 // pred_check
        %p128 = pneg %p127
      $region22: #{tpu_custom_call.1} parent=5 // pred_check_branch
        %130 = sbr.rel (%p128) target = $region24
      $region23: #{tpu_custom_call.1} parent=5 // pred_region
        // Predicated region
        $region25: #{tpu_custom_call.1} parent=23 // pred_check
          %p131 = pneg %p32
        $region26: #{tpu_custom_call.1} parent=23 // pred_check_branch
          %133 = sbr.rel (%p131) target = $region28
        $region27: #{tpu_custom_call.1} parent=23 // pred_region
          %p134 = scmp.lt.s32.totalorder %s12, 1
          %s135 = scalar_select %p134, %s12, 1
          %s136 = smul.addr %s135, 54
          %s137 = smul.addr %s136, 8
          %s138 = scalar_lea.vmem %s0, %s137
        $region28: #{tpu_custom_call.1} parent=23 // pred_fallthru
          _
      $region24: #{tpu_custom_call.1} parent=5 // pred_fallthru
        _
      %p139 = scmp.le.s32.totalorder 1, %s12
      %p140 = scmp.lt.s32.totalorder %s12, 3
      %p141 = pnand %p139, %p140
      %p142 = pneg %p141
      // Predicated region
      $region29: #{tpu_custom_call.1} parent=5 // pred_check
        _
      $region30: #{tpu_custom_call.1} parent=5 // pred_check_branch
        %144 = sbr.rel (%p141) target = $region32
      $region31: #{tpu_custom_call.1} parent=5 // pred_region
        %s145 = ssub.s32 %s12, 1
        %p146 = scmp.lt.s32.totalorder %s17, 1
        %s147 = scalar_select %p146, %s17, 1
        %s148 = smul.addr %s147, 54
        %s149 = smul.addr %s148, 8
        %s150 = scalar_lea.vmem %s0, %s149
        %p151 = pneg %p38
        %p152 = pneg %p35
        %p153 = pneg %p59
        %p154 = pneg %p56
        %p155 = pneg %p80
        %p156 = pneg %p77
        %p157 = pneg %p106
        %p158 = pneg %p103
        %s159 = sand.u32 %s93, 1
        %s160 = scalar_lea.sflag [#allocation4], %s159
        %s161 = sand.u32 %s93, 1
        %s162 = smul.addr %s161, 256
        %s163 = scalar_lea.vmem [#allocation3], %s162
        %p164 = scmp.lt.s32.totalorder %s17, 1
        %s165 = scalar_select %p164, %s17, 1
        %s166 = smul.addr %s165, 54
        %s167 = smul.addr %s166, 8
        %s168 = scalar_lea.vmem %s0, %s167
        %v169 = vld [vmem:[%s168] sm:$0xff]
        %v170 = vld [vmem:[%s168 + $0x8] sm:$0xff]
        %v171 = vld [vmem:[%s168 + $0x10] sm:$0x3]
        %v172 = vld [vmem:[%s168 + $0x18] sm:$0xff]
        %v173 = vld [vmem:[%s168 + $0x20] sm:$0xff]
        %v174 = vld [vmem:[%s168 + $0x28] sm:$0x3]
        %v175 = vld [vmem:[%s168 + $0x30] sm:$0xff]
        %v176 = vld [vmem:[%s168 + $0x38] sm:$0xff]
        %v177 = vld [vmem:[%s168 + $0x40] sm:$0x3]
        %v178 = vld [vmem:[%s168 + $0x48] sm:$0xff]
        %v179 = vld [vmem:[%s168 + $0x50] sm:$0xff]
        %v180 = vld [vmem:[%s168 + $0x58] sm:$0x3]
        %v181 = vld [vmem:[%s168 + $0x60] sm:$0xff]
        %v182 = vld [vmem:[%s168 + $0x68] sm:$0xff]
        %v183 = vld [vmem:[%s168 + $0x70] sm:$0x3]
        %v184 = vld [vmem:[%s168 + $0x78] sm:$0xff]
        %v185 = vld [vmem:[%s168 + $0x80] sm:$0xff]
        %v186 = vld [vmem:[%s168 + $0x88] sm:$0x3]
        %v187 = vld [vmem:[%s168 + $0x90] sm:$0xff]
        %v188 = vld [vmem:[%s168 + $0x98] sm:$0xff]
        %v189 = vld [vmem:[%s168 + $0xa0] sm:$0x3]
        %v190 = vld [vmem:[%s168 + $0xa8] sm:$0xff]
        %v191 = vld [vmem:[%s168 + $0xb0] sm:$0xff]
        %v192 = vld [vmem:[%s168 + $0xb8] sm:$0x3]
        %v193 = vld [vmem:[%s168 + $0xc0] sm:$0xff]
        %v194 = vld [vmem:[%s168 + $0xc8] sm:$0xff]
        %v195 = vld [vmem:[%s168 + $0xd0] sm:$0x3]
        %v196 = vld [vmem:[%s168 + $0xd8] sm:$0xff]
        %v197 = vld [vmem:[%s168 + $0xe0] sm:$0xff]
        %v198 = vld [vmem:[%s168 + $0xe8] sm:$0x3]
        %v199 = vld [vmem:[%s168 + $0xf0] sm:$0xff]
        %v200 = vld [vmem:[%s168 + $0xf8] sm:$0xff]
        %v201 = vld [vmem:[%s168 + $0x100] sm:$0x3]
        %v202 = vld [vmem:[%s168 + $0x108] sm:$0xff]
        %v203 = vld [vmem:[%s168 + $0x110] sm:$0xff]
        %v204 = vld [vmem:[%s168 + $0x118] sm:$0x3]
        %v205 = vld [vmem:[%s168 + $0x120] sm:$0xff]
        %v206 = vld [vmem:[%s168 + $0x128] sm:$0xff]
        %v207 = vld [vmem:[%s168 + $0x130] sm:$0x3]
        %v208 = vld [vmem:[%s168 + $0x138] sm:$0xff]
        %v209 = vld [vmem:[%s168 + $0x140] sm:$0xff]
        %v210 = vld [vmem:[%s168 + $0x148] sm:$0x3]
        %v211 = vld [vmem:[%s168 + $0x150] sm:$0xff]
        %v212 = vld [vmem:[%s168 + $0x158] sm:$0xff]
        %v213 = vld [vmem:[%s168 + $0x160] sm:$0x3]
        %v214 = vld [vmem:[%s168 + $0x168] sm:$0xff]
        %v215 = vld [vmem:[%s168 + $0x170] sm:$0xff]
        %v216 = vld [vmem:[%s168 + $0x178] sm:$0x3]
        %v217 = vld [vmem:[%s168 + $0x180] sm:$0xff]
        %v218 = vld [vmem:[%s168 + $0x188] sm:$0xff]
        %v219 = vld [vmem:[%s168 + $0x190] sm:$0x3]
        %v220 = vld [vmem:[%s168 + $0x198] sm:$0xff]
        %v221 = vld [vmem:[%s168 + $0x1a0] sm:$0xff]
        %v222 = vld [vmem:[%s168 + $0x1a8] sm:$0x3]
        %v223 = vld [vmem:[%s1] sm:$0xff]
        %v224 = vld [vmem:[%s1 + $0x8] sm:$0xff]
        %v225 = vld [vmem:[%s1 + $0x10] sm:$0xff]
        %v226 = vld [vmem:[%s1 + $0x18] sm:$0xff]
        %v227 = vld [vmem:[%s1 + $0x20] sm:$0xf]
        %v228 = vld [vmem:[%s2] sm:$0x1]
        %vm277 = vcmask 1046528
        %v278 = vrot.slane %v169, 1
        %v279 = vrot.slane %v170, 1
        %v280 = vsel %vm277, %v278, %v279
        %v281 = vrot.slane %v171, 1
        %v282 = vsel %vm277, %v279, %v281
        %v283 = vrot.slane %v172, 1
        %v284 = vrot.slane %v173, 1
        %v285 = vsel %vm277, %v283, %v284
        %v286 = vrot.slane %v174, 1
        %v287 = vsel %vm277, %v284, %v286
        %v288 = vrot.slane %v175, 1
        %v289 = vrot.slane %v176, 1
        %v290 = vsel %vm277, %v288, %v289
        %v291 = vrot.slane %v177, 1
        %v292 = vsel %vm277, %v289, %v291
        %v293 = vrot.slane %v178, 1
        %v294 = vrot.slane %v179, 1
        %v295 = vsel %vm277, %v293, %v294
        %v296 = vrot.slane %v180, 1
        %v297 = vsel %vm277, %v294, %v296
        %v298 = vrot.slane %v181, 1
        %v299 = vrot.slane %v182, 1
        %v300 = vsel %vm277, %v298, %v299
        %v301 = vrot.slane %v183, 1
        %v302 = vsel %vm277, %v299, %v301
        %v303 = vrot.slane %v184, 1
        %v304 = vrot.slane %v185, 1
        %v305 = vsel %vm277, %v303, %v304
        %v306 = vrot.slane %v186, 1
        %v307 = vsel %vm277, %v304, %v306
        %v308 = vrot.slane %v187, 1
        %v309 = vrot.slane %v188, 1
        %v310 = vsel %vm277, %v308, %v309
        %v311 = vrot.slane %v189, 1
        %v312 = vsel %vm277, %v309, %v311
        %v313 = vrot.slane %v190, 1
        %v314 = vrot.slane %v191, 1
        %v315 = vsel %vm277, %v313, %v314
        %v316 = vrot.slane %v192, 1
        %v317 = vsel %vm277, %v314, %v316
        %v318 = vrot.slane %v193, 1
        %v319 = vrot.slane %v194, 1
        %v320 = vsel %vm277, %v318, %v319
        %v321 = vrot.slane %v195, 1
        %v322 = vsel %vm277, %v319, %v321
        %v323 = vrot.slane %v196, 1
        %v324 = vrot.slane %v197, 1
        %v325 = vsel %vm277, %v323, %v324
        %v326 = vrot.slane %v198, 1
        %v327 = vsel %vm277, %v324, %v326
        %v328 = vrot.slane %v199, 1
        %v329 = vrot.slane %v200, 1
        %v330 = vsel %vm277, %v328, %v329
        %v331 = vrot.slane %v201, 1
        %v332 = vsel %vm277, %v329, %v331
        %v333 = vrot.slane %v202, 1
        %v334 = vrot.slane %v203, 1
        %v335 = vsel %vm277, %v333, %v334
        %v336 = vrot.slane %v204, 1
        %v337 = vsel %vm277, %v334, %v336
        %v338 = vrot.slane %v205, 1
        %v339 = vrot.slane %v206, 1
        %v340 = vsel %vm277, %v338, %v339
        %v341 = vrot.slane %v207, 1
        %v342 = vsel %vm277, %v339, %v341
        %v343 = vrot.slane %v208, 1
        %v344 = vrot.slane %v209, 1
        %v345 = vsel %vm277, %v343, %v344
        %v346 = vrot.slane %v210, 1
        %v347 = vsel %vm277, %v344, %v346
        %v348 = vrot.slane %v211, 1
        %v349 = vrot.slane %v212, 1
        %v350 = vsel %vm277, %v348, %v349
        %v351 = vrot.slane %v213, 1
        %v352 = vsel %vm277, %v349, %v351
        %v353 = vrot.slane %v214, 1
        %v354 = vrot.slane %v215, 1
        %v355 = vsel %vm277, %v353, %v354
        %v356 = vrot.slane %v216, 1
        %v357 = vsel %vm277, %v354, %v356
        %vm358 = vcmask 1045504
        %v359 = vrot.slane %v169, 2
        %v360 = vrot.slane %v170, 2
        %v361 = vsel %vm358, %v359, %v360
        %v362 = vrot.slane %v171, 2
        %v363 = vsel %vm358, %v360, %v362
        %v364 = vrot.slane %v172, 2
        %v365 = vrot.slane %v173, 2
        %v366 = vsel %vm358, %v364, %v365
        %v367 = vrot.slane %v174, 2
        %v368 = vsel %vm358, %v365, %v367
        %v369 = vrot.slane %v175, 2
        %v370 = vrot.slane %v176, 2
        %v371 = vsel %vm358, %v369, %v370
        %v372 = vrot.slane %v177, 2
        %v373 = vsel %vm358, %v370, %v372
        %v374 = vrot.slane %v178, 2
        %v375 = vrot.slane %v179, 2
        %v376 = vsel %vm358, %v374, %v375
        %v377 = vrot.slane %v180, 2
        %v378 = vsel %vm358, %v375, %v377
        %v379 = vrot.slane %v181, 2
        %v380 = vrot.slane %v182, 2
        %v381 = vsel %vm358, %v379, %v380
        %v382 = vrot.slane %v183, 2
        %v383 = vsel %vm358, %v380, %v382
        %v384 = vrot.slane %v184, 2
        %v385 = vrot.slane %v185, 2
        %v386 = vsel %vm358, %v384, %v385
        %v387 = vrot.slane %v186, 2
        %v388 = vsel %vm358, %v385, %v387
        %v389 = vrot.slane %v187, 2
        %v390 = vrot.slane %v188, 2
        %v391 = vsel %vm358, %v389, %v390
        %v392 = vrot.slane %v189, 2
        %v393 = vsel %vm358, %v390, %v392
        %v394 = vrot.slane %v190, 2
        %v395 = vrot.slane %v191, 2
        %v396 = vsel %vm358, %v394, %v395
        %v397 = vrot.slane %v192, 2
        %v398 = vsel %vm358, %v395, %v397
        %v399 = vrot.slane %v193, 2
        %v400 = vrot.slane %v194, 2
        %v401 = vsel %vm358, %v399, %v400
        %v402 = vrot.slane %v195, 2
        %v403 = vsel %vm358, %v400, %v402
        %v404 = vrot.slane %v196, 2
        %v405 = vrot.slane %v197, 2
        %v406 = vsel %vm358, %v404, %v405
        %v407 = vrot.slane %v198, 2
        %v408 = vsel %vm358, %v405, %v407
        %v409 = vrot.slane %v199, 2
        %v410 = vrot.slane %v200, 2
        %v411 = vsel %vm358, %v409, %v410
        %v412 = vrot.slane %v201, 2
        %v413 = vsel %vm358, %v410, %v412
        %v414 = vrot.slane %v202, 2
        %v415 = vrot.slane %v203, 2
        %v416 = vsel %vm358, %v414, %v415
        %v417 = vrot.slane %v204, 2
        %v418 = vsel %vm358, %v415, %v417
        %v419 = vrot.slane %v205, 2
        %v420 = vrot.slane %v206, 2
        %v421 = vsel %vm358, %v419, %v420
        %v422 = vrot.slane %v207, 2
        %v423 = vsel %vm358, %v420, %v422
        %v424 = vrot.slane %v208, 2
        %v425 = vrot.slane %v209, 2
        %v426 = vsel %vm358, %v424, %v425
        %v427 = vrot.slane %v210, 2
        %v428 = vsel %vm358, %v425, %v427
        %v429 = vrot.slane %v211, 2
        %v430 = vrot.slane %v212, 2
        %v431 = vsel %vm358, %v429, %v430
        %v432 = vrot.slane %v213, 2
        %v433 = vsel %vm358, %v430, %v432
        %v434 = vrot.slane %v214, 2
        %v435 = vrot.slane %v215, 2
        %v436 = vsel %vm358, %v434, %v435
        %v437 = vrot.slane %v216, 2
        %v438 = vsel %vm358, %v435, %v437
        %v442 = vrot.slane %v217, 1
        %v443 = vrot.slane %v218, 1
        %v444 = vsel %vm277, %v442, %v443
        %v445 = vrot.slane %v219, 1
        %v446 = vsel %vm277, %v443, %v445
        %v447 = vrot.slane %v217, 2
        %v448 = vrot.slane %v218, 2
        %v449 = vsel %vm358, %v447, %v448
        %v450 = vrot.slane %v219, 2
        %v451 = vsel %vm358, %v448, %v450
        %v455 = vrot.slane %v220, 1
        %v456 = vrot.slane %v221, 1
        %v457 = vsel %vm277, %v455, %v456
        %v458 = vrot.slane %v222, 1
        %v459 = vsel %vm277, %v456, %v458
        %v460 = vrot.slane %v220, 2
        %v461 = vrot.slane %v221, 2
        %v462 = vsel %vm358, %v460, %v461
        %v463 = vrot.slane %v222, 2
        %v464 = vsel %vm358, %v461, %v463
        %465 = vrot.lane.b32.xlu0 %v280, 4
        %v466 = vpop.permute.xlu0 %465
        %467 = vrot.lane.b32.xlu0 %v282, 4
        %v468 = vpop.permute.xlu0 %467
        %469 = vrot.lane.b32.xlu0 %v285, 4
        %v470 = vpop.permute.xlu0 %469
        %471 = vrot.lane.b32.xlu0 %v287, 4
        %v472 = vpop.permute.xlu0 %471
        %473 = vrot.lane.b32.xlu0 %v290, 4
        %v474 = vpop.permute.xlu0 %473
        %475 = vrot.lane.b32.xlu0 %v292, 4
        %v476 = vpop.permute.xlu0 %475
        %477 = vrot.lane.b32.xlu0 %v295, 4
        %v478 = vpop.permute.xlu0 %477
        %479 = vrot.lane.b32.xlu0 %v297, 4
        %v480 = vpop.permute.xlu0 %479
        %481 = vrot.lane.b32.xlu0 %v300, 4
        %v482 = vpop.permute.xlu0 %481
        %483 = vrot.lane.b32.xlu0 %v302, 4
        %v484 = vpop.permute.xlu0 %483
        %485 = vrot.lane.b32.xlu0 %v305, 4
        %v486 = vpop.permute.xlu0 %485
        %487 = vrot.lane.b32.xlu0 %v307, 4
        %v488 = vpop.permute.xlu0 %487
        %489 = vrot.lane.b32.xlu0 %v310, 4
        %v490 = vpop.permute.xlu0 %489
        %491 = vrot.lane.b32.xlu0 %v312, 4
        %v492 = vpop.permute.xlu0 %491
        %493 = vrot.lane.b32.xlu0 %v315, 4
        %v494 = vpop.permute.xlu0 %493
        %495 = vrot.lane.b32.xlu0 %v317, 4
        %v496 = vpop.permute.xlu0 %495
        %497 = vrot.lane.b32.xlu0 %v320, 4
        %v498 = vpop.permute.xlu0 %497
        %499 = vrot.lane.b32.xlu0 %v322, 4
        %v500 = vpop.permute.xlu0 %499
        %501 = vrot.lane.b32.xlu0 %v325, 4
        %v502 = vpop.permute.xlu0 %501
        %503 = vrot.lane.b32.xlu0 %v327, 4
        %v504 = vpop.permute.xlu0 %503
        %505 = vrot.lane.b32.xlu0 %v330, 4
        %v506 = vpop.permute.xlu0 %505
        %507 = vrot.lane.b32.xlu0 %v332, 4
        %v508 = vpop.permute.xlu0 %507
        %509 = vrot.lane.b32.xlu0 %v335, 4
        %v510 = vpop.permute.xlu0 %509
        %511 = vrot.lane.b32.xlu0 %v337, 4
        %v512 = vpop.permute.xlu0 %511
        %513 = vrot.lane.b32.xlu0 %v340, 4
        %v514 = vpop.permute.xlu0 %513
        %515 = vrot.lane.b32.xlu0 %v342, 4
        %v516 = vpop.permute.xlu0 %515
        %517 = vrot.lane.b32.xlu0 %v345, 4
        %v518 = vpop.permute.xlu0 %517
        %519 = vrot.lane.b32.xlu0 %v347, 4
        %v520 = vpop.permute.xlu0 %519
        %521 = vrot.lane.b32.xlu0 %v350, 4
        %v522 = vpop.permute.xlu0 %521
        %523 = vrot.lane.b32.xlu0 %v352, 4
        %v524 = vpop.permute.xlu0 %523
        %525 = vrot.lane.b32.xlu0 %v355, 4
        %v526 = vpop.permute.xlu0 %525
        %527 = vrot.lane.b32.xlu0 %v357, 4
        %v528 = vpop.permute.xlu0 %527
        %561 = vrot.lane.b32.xlu0 %v361, 8
        %v562 = vpop.permute.xlu0 %561
        %563 = vrot.lane.b32.xlu0 %v363, 8
        %v564 = vpop.permute.xlu0 %563
        %565 = vrot.lane.b32.xlu0 %v366, 8
        %v566 = vpop.permute.xlu0 %565
        %567 = vrot.lane.b32.xlu0 %v368, 8
        %v568 = vpop.permute.xlu0 %567
        %569 = vrot.lane.b32.xlu0 %v371, 8
        %v570 = vpop.permute.xlu0 %569
        %571 = vrot.lane.b32.xlu0 %v373, 8
        %v572 = vpop.permute.xlu0 %571
        %573 = vrot.lane.b32.xlu0 %v376, 8
        %v574 = vpop.permute.xlu0 %573
        %575 = vrot.lane.b32.xlu0 %v378, 8
        %v576 = vpop.permute.xlu0 %575
        %577 = vrot.lane.b32.xlu0 %v381, 8
        %v578 = vpop.permute.xlu0 %577
        %579 = vrot.lane.b32.xlu0 %v383, 8
        %v580 = vpop.permute.xlu0 %579
        %581 = vrot.lane.b32.xlu0 %v386, 8
        %v582 = vpop.permute.xlu0 %581
        %583 = vrot.lane.b32.xlu0 %v388, 8
        %v584 = vpop.permute.xlu0 %583
        %585 = vrot.lane.b32.xlu0 %v391, 8
        %v586 = vpop.permute.xlu0 %585
        %587 = vrot.lane.b32.xlu0 %v393, 8
        %v588 = vpop.permute.xlu0 %587
        %589 = vrot.lane.b32.xlu0 %v396, 8
        %v590 = vpop.permute.xlu0 %589
        %591 = vrot.lane.b32.xlu0 %v398, 8
        %v592 = vpop.permute.xlu0 %591
        %593 = vrot.lane.b32.xlu0 %v401, 8
        %v594 = vpop.permute.xlu0 %593
        %595 = vrot.lane.b32.xlu0 %v403, 8
        %v596 = vpop.permute.xlu0 %595
        %597 = vrot.lane.b32.xlu0 %v406, 8
        %v598 = vpop.permute.xlu0 %597
        %599 = vrot.lane.b32.xlu0 %v408, 8
        %v600 = vpop.permute.xlu0 %599
        %601 = vrot.lane.b32.xlu0 %v411, 8
        %v602 = vpop.permute.xlu0 %601
        %603 = vrot.lane.b32.xlu0 %v413, 8
        %v604 = vpop.permute.xlu0 %603
        %605 = vrot.lane.b32.xlu0 %v416, 8
        %v606 = vpop.permute.xlu0 %605
        %607 = vrot.lane.b32.xlu0 %v418, 8
        %v608 = vpop.permute.xlu0 %607
        %609 = vrot.lane.b32.xlu0 %v421, 8
        %v610 = vpop.permute.xlu0 %609
        %611 = vrot.lane.b32.xlu0 %v423, 8
        %v612 = vpop.permute.xlu0 %611
        %613 = vrot.lane.b32.xlu0 %v426, 8
        %v614 = vpop.permute.xlu0 %613
        %615 = vrot.lane.b32.xlu0 %v428, 8
        %v616 = vpop.permute.xlu0 %615
        %617 = vrot.lane.b32.xlu0 %v431, 8
        %v618 = vpop.permute.xlu0 %617
        %619 = vrot.lane.b32.xlu0 %v433, 8
        %v620 = vpop.permute.xlu0 %619
        %621 = vrot.lane.b32.xlu0 %v436, 8
        %v622 = vpop.permute.xlu0 %621
        %623 = vrot.lane.b32.xlu0 %v438, 8
        %v624 = vpop.permute.xlu0 %623
        %657 = vrot.lane.b32.xlu0 %v172, 12
        %v658 = vpop.permute.xlu0 %657
        %659 = vrot.lane.b32.xlu0 %v173, 12
        %v660 = vpop.permute.xlu0 %659
        %661 = vrot.lane.b32.xlu0 %v175, 12
        %v662 = vpop.permute.xlu0 %661
        %663 = vrot.lane.b32.xlu0 %v176, 12
        %v664 = vpop.permute.xlu0 %663
        %665 = vrot.lane.b32.xlu0 %v178, 12
        %v666 = vpop.permute.xlu0 %665
        %667 = vrot.lane.b32.xlu0 %v179, 12
        %v668 = vpop.permute.xlu0 %667
        %669 = vrot.lane.b32.xlu0 %v181, 12
        %v670 = vpop.permute.xlu0 %669
        %671 = vrot.lane.b32.xlu0 %v182, 12
        %v672 = vpop.permute.xlu0 %671
        %673 = vrot.lane.b32.xlu0 %v184, 12
        %v674 = vpop.permute.xlu0 %673
        %675 = vrot.lane.b32.xlu0 %v185, 12
        %v676 = vpop.permute.xlu0 %675
        %677 = vrot.lane.b32.xlu0 %v187, 12
        %v678 = vpop.permute.xlu0 %677
        %679 = vrot.lane.b32.xlu0 %v188, 12
        %v680 = vpop.permute.xlu0 %679
        %681 = vrot.lane.b32.xlu0 %v190, 12
        %v682 = vpop.permute.xlu0 %681
        %683 = vrot.lane.b32.xlu0 %v191, 12
        %v684 = vpop.permute.xlu0 %683
        %685 = vrot.lane.b32.xlu0 %v193, 12
        %v686 = vpop.permute.xlu0 %685
        %687 = vrot.lane.b32.xlu0 %v194, 12
        %v688 = vpop.permute.xlu0 %687
        %689 = vrot.lane.b32.xlu0 %v196, 12
        %v690 = vpop.permute.xlu0 %689
        %691 = vrot.lane.b32.xlu0 %v197, 12
        %v692 = vpop.permute.xlu0 %691
        %693 = vrot.lane.b32.xlu0 %v199, 12
        %v694 = vpop.permute.xlu0 %693
        %695 = vrot.lane.b32.xlu0 %v200, 12
        %v696 = vpop.permute.xlu0 %695
        %697 = vrot.lane.b32.xlu0 %v202, 12
        %v698 = vpop.permute.xlu0 %697
        %699 = vrot.lane.b32.xlu0 %v203, 12
        %v700 = vpop.permute.xlu0 %699
        %701 = vrot.lane.b32.xlu0 %v205, 12
        %v702 = vpop.permute.xlu0 %701
        %703 = vrot.lane.b32.xlu0 %v206, 12
        %v704 = vpop.permute.xlu0 %703
        %705 = vrot.lane.b32.xlu0 %v208, 12
        %v706 = vpop.permute.xlu0 %705
        %707 = vrot.lane.b32.xlu0 %v209, 12
        %v708 = vpop.permute.xlu0 %707
        %709 = vrot.lane.b32.xlu0 %v211, 12
        %v710 = vpop.permute.xlu0 %709
        %711 = vrot.lane.b32.xlu0 %v212, 12
        %v712 = vpop.permute.xlu0 %711
        %713 = vrot.lane.b32.xlu0 %v214, 12
        %v714 = vpop.permute.xlu0 %713
        %715 = vrot.lane.b32.xlu0 %v215, 12
        %v716 = vpop.permute.xlu0 %715
        %717 = vrot.lane.b32.xlu0 %v217, 12
        %v718 = vpop.permute.xlu0 %717
        %719 = vrot.lane.b32.xlu0 %v218, 12
        %v720 = vpop.permute.xlu0 %719
        %753 = vrot.lane.b32.xlu0 %v285, 16
        %v754 = vpop.permute.xlu0 %753
        %755 = vrot.lane.b32.xlu0 %v287, 16
        %v756 = vpop.permute.xlu0 %755
        %757 = vrot.lane.b32.xlu0 %v290, 16
        %v758 = vpop.permute.xlu0 %757
        %759 = vrot.lane.b32.xlu0 %v292, 16
        %v760 = vpop.permute.xlu0 %759
        %761 = vrot.lane.b32.xlu0 %v295, 16
        %v762 = vpop.permute.xlu0 %761
        %763 = vrot.lane.b32.xlu0 %v297, 16
        %v764 = vpop.permute.xlu0 %763
        %765 = vrot.lane.b32.xlu0 %v300, 16
        %v766 = vpop.permute.xlu0 %765
        %767 = vrot.lane.b32.xlu0 %v302, 16
        %v768 = vpop.permute.xlu0 %767
        %769 = vrot.lane.b32.xlu0 %v305, 16
        %v770 = vpop.permute.xlu0 %769
        %771 = vrot.lane.b32.xlu0 %v307, 16
        %v772 = vpop.permute.xlu0 %771
        %773 = vrot.lane.b32.xlu0 %v310, 16
        %v774 = vpop.permute.xlu0 %773
        %775 = vrot.lane.b32.xlu0 %v312, 16
        %v776 = vpop.permute.xlu0 %775
        %777 = vrot.lane.b32.xlu0 %v315, 16
        %v778 = vpop.permute.xlu0 %777
        %779 = vrot.lane.b32.xlu0 %v317, 16
        %v780 = vpop.permute.xlu0 %779
        %781 = vrot.lane.b32.xlu0 %v320, 16
        %v782 = vpop.permute.xlu0 %781
        %783 = vrot.lane.b32.xlu0 %v322, 16
        %v784 = vpop.permute.xlu0 %783
        %785 = vrot.lane.b32.xlu0 %v325, 16
        %v786 = vpop.permute.xlu0 %785
        %787 = vrot.lane.b32.xlu0 %v327, 16
        %v788 = vpop.permute.xlu0 %787
        %789 = vrot.lane.b32.xlu0 %v330, 16
        %v790 = vpop.permute.xlu0 %789
        %791 = vrot.lane.b32.xlu0 %v332, 16
        %v792 = vpop.permute.xlu0 %791
        %793 = vrot.lane.b32.xlu0 %v335, 16
        %v794 = vpop.permute.xlu0 %793
        %795 = vrot.lane.b32.xlu0 %v337, 16
        %v796 = vpop.permute.xlu0 %795
        %797 = vrot.lane.b32.xlu0 %v340, 16
        %v798 = vpop.permute.xlu0 %797
        %799 = vrot.lane.b32.xlu0 %v342, 16
        %v800 = vpop.permute.xlu0 %799
        %801 = vrot.lane.b32.xlu0 %v345, 16
        %v802 = vpop.permute.xlu0 %801
        %803 = vrot.lane.b32.xlu0 %v347, 16
        %v804 = vpop.permute.xlu0 %803
        %805 = vrot.lane.b32.xlu0 %v350, 16
        %v806 = vpop.permute.xlu0 %805
        %807 = vrot.lane.b32.xlu0 %v352, 16
        %v808 = vpop.permute.xlu0 %807
        %809 = vrot.lane.b32.xlu0 %v355, 16
        %v810 = vpop.permute.xlu0 %809
        %811 = vrot.lane.b32.xlu0 %v357, 16
        %v812 = vpop.permute.xlu0 %811
        %813 = vrot.lane.b32.xlu0 %v444, 16
        %v814 = vpop.permute.xlu0 %813
        %815 = vrot.lane.b32.xlu0 %v446, 16
        %v816 = vpop.permute.xlu0 %815
        %849 = vrot.lane.b32.xlu0 %v366, 20
        %v850 = vpop.permute.xlu0 %849
        %851 = vrot.lane.b32.xlu0 %v368, 20
        %v852 = vpop.permute.xlu0 %851
        %853 = vrot.lane.b32.xlu0 %v371, 20
        %v854 = vpop.permute.xlu0 %853
        %855 = vrot.lane.b32.xlu0 %v373, 20
        %v856 = vpop.permute.xlu0 %855
        %857 = vrot.lane.b32.xlu0 %v376, 20
        %v858 = vpop.permute.xlu0 %857
        %859 = vrot.lane.b32.xlu0 %v378, 20
        %v860 = vpop.permute.xlu0 %859
        %861 = vrot.lane.b32.xlu0 %v381, 20
        %v862 = vpop.permute.xlu0 %861
        %863 = vrot.lane.b32.xlu0 %v383, 20
        %v864 = vpop.permute.xlu0 %863
        %865 = vrot.lane.b32.xlu0 %v386, 20
        %v866 = vpop.permute.xlu0 %865
        %867 = vrot.lane.b32.xlu0 %v388, 20
        %v868 = vpop.permute.xlu0 %867
        %869 = vrot.lane.b32.xlu0 %v391, 20
        %v870 = vpop.permute.xlu0 %869
        %871 = vrot.lane.b32.xlu0 %v393, 20
        %v872 = vpop.permute.xlu0 %871
        %873 = vrot.lane.b32.xlu0 %v396, 20
        %v874 = vpop.permute.xlu0 %873
        %875 = vrot.lane.b32.xlu0 %v398, 20
        %v876 = vpop.permute.xlu0 %875
        %877 = vrot.lane.b32.xlu0 %v401, 20
        %v878 = vpop.permute.xlu0 %877
        %879 = vrot.lane.b32.xlu0 %v403, 20
        %v880 = vpop.permute.xlu0 %879
        %881 = vrot.lane.b32.xlu0 %v406, 20
        %v882 = vpop.permute.xlu0 %881
        %883 = vrot.lane.b32.xlu0 %v408, 20
        %v884 = vpop.permute.xlu0 %883
        %885 = vrot.lane.b32.xlu0 %v411, 20
        %v886 = vpop.permute.xlu0 %885
        %887 = vrot.lane.b32.xlu0 %v413, 20
        %v888 = vpop.permute.xlu0 %887
        %889 = vrot.lane.b32.xlu0 %v416, 20
        %v890 = vpop.permute.xlu0 %889
        %891 = vrot.lane.b32.xlu0 %v418, 20
        %v892 = vpop.permute.xlu0 %891
        %893 = vrot.lane.b32.xlu0 %v421, 20
        %v894 = vpop.permute.xlu0 %893
        %895 = vrot.lane.b32.xlu0 %v423, 20
        %v896 = vpop.permute.xlu0 %895
        %897 = vrot.lane.b32.xlu0 %v426, 20
        %v898 = vpop.permute.xlu0 %897
        %899 = vrot.lane.b32.xlu0 %v428, 20
        %v900 = vpop.permute.xlu0 %899
        %901 = vrot.lane.b32.xlu0 %v431, 20
        %v902 = vpop.permute.xlu0 %901
        %903 = vrot.lane.b32.xlu0 %v433, 20
        %v904 = vpop.permute.xlu0 %903
        %905 = vrot.lane.b32.xlu0 %v436, 20
        %v906 = vpop.permute.xlu0 %905
        %907 = vrot.lane.b32.xlu0 %v438, 20
        %v908 = vpop.permute.xlu0 %907
        %909 = vrot.lane.b32.xlu0 %v449, 20
        %v910 = vpop.permute.xlu0 %909
        %911 = vrot.lane.b32.xlu0 %v451, 20
        %v912 = vpop.permute.xlu0 %911
        %945 = vrot.lane.b32.xlu0 %v175, 24
        %v946 = vpop.permute.xlu0 %945
        %947 = vrot.lane.b32.xlu0 %v176, 24
        %v948 = vpop.permute.xlu0 %947
        %949 = vrot.lane.b32.xlu0 %v178, 24
        %v950 = vpop.permute.xlu0 %949
        %951 = vrot.lane.b32.xlu0 %v179, 24
        %v952 = vpop.permute.xlu0 %951
        %953 = vrot.lane.b32.xlu0 %v181, 24
        %v954 = vpop.permute.xlu0 %953
        %955 = vrot.lane.b32.xlu0 %v182, 24
        %v956 = vpop.permute.xlu0 %955
        %957 = vrot.lane.b32.xlu0 %v184, 24
        %v958 = vpop.permute.xlu0 %957
        %959 = vrot.lane.b32.xlu0 %v185, 24
        %v960 = vpop.permute.xlu0 %959
        %961 = vrot.lane.b32.xlu0 %v187, 24
        %v962 = vpop.permute.xlu0 %961
        %963 = vrot.lane.b32.xlu0 %v188, 24
        %v964 = vpop.permute.xlu0 %963
        %965 = vrot.lane.b32.xlu0 %v190, 24
        %v966 = vpop.permute.xlu0 %965
        %967 = vrot.lane.b32.xlu0 %v191, 24
        %v968 = vpop.permute.xlu0 %967
        %969 = vrot.lane.b32.xlu0 %v193, 24
        %v970 = vpop.permute.xlu0 %969
        %971 = vrot.lane.b32.xlu0 %v194, 24
        %v972 = vpop.permute.xlu0 %971
        %973 = vrot.lane.b32.xlu0 %v196, 24
        %v974 = vpop.permute.xlu0 %973
        %975 = vrot.lane.b32.xlu0 %v197, 24
        %v976 = vpop.permute.xlu0 %975
        %977 = vrot.lane.b32.xlu0 %v199, 24
        %v978 = vpop.permute.xlu0 %977
        %979 = vrot.lane.b32.xlu0 %v200, 24
        %v980 = vpop.permute.xlu0 %979
        %981 = vrot.lane.b32.xlu0 %v202, 24
        %v982 = vpop.permute.xlu0 %981
        %983 = vrot.lane.b32.xlu0 %v203, 24
        %v984 = vpop.permute.xlu0 %983
        %985 = vrot.lane.b32.xlu0 %v205, 24
        %v986 = vpop.permute.xlu0 %985
        %987 = vrot.lane.b32.xlu0 %v206, 24
        %v988 = vpop.permute.xlu0 %987
        %989 = vrot.lane.b32.xlu0 %v208, 24
        %v990 = vpop.permute.xlu0 %989
        %991 = vrot.lane.b32.xlu0 %v209, 24
        %v992 = vpop.permute.xlu0 %991
        %993 = vrot.lane.b32.xlu0 %v211, 24
        %v994 = vpop.permute.xlu0 %993
        %995 = vrot.lane.b32.xlu0 %v212, 24
        %v996 = vpop.permute.xlu0 %995
        %997 = vrot.lane.b32.xlu0 %v214, 24
        %v998 = vpop.permute.xlu0 %997
        %999 = vrot.lane.b32.xlu0 %v215, 24
        %v1000 = vpop.permute.xlu0 %999
        %1001 = vrot.lane.b32.xlu0 %v217, 24
        %v1002 = vpop.permute.xlu0 %1001
        %1003 = vrot.lane.b32.xlu0 %v218, 24
        %v1004 = vpop.permute.xlu0 %1003
        %1005 = vrot.lane.b32.xlu0 %v220, 24
        %v1006 = vpop.permute.xlu0 %1005
        %1007 = vrot.lane.b32.xlu0 %v221, 24
        %v1008 = vpop.permute.xlu0 %1007
        %1041 = vrot.lane.b32.xlu0 %v290, 28
        %v1042 = vpop.permute.xlu0 %1041
        %1043 = vrot.lane.b32.xlu0 %v292, 28
        %v1044 = vpop.permute.xlu0 %1043
        %1045 = vrot.lane.b32.xlu0 %v295, 28
        %v1046 = vpop.permute.xlu0 %1045
        %1047 = vrot.lane.b32.xlu0 %v297, 28
        %v1048 = vpop.permute.xlu0 %1047
        %1049 = vrot.lane.b32.xlu0 %v300, 28
        %v1050 = vpop.permute.xlu0 %1049
        %1051 = vrot.lane.b32.xlu0 %v302, 28
        %v1052 = vpop.permute.xlu0 %1051
        %1053 = vrot.lane.b32.xlu0 %v305, 28
        %v1054 = vpop.permute.xlu0 %1053
        %1055 = vrot.lane.b32.xlu0 %v307, 28
        %v1056 = vpop.permute.xlu0 %1055
        %1057 = vrot.lane.b32.xlu0 %v310, 28
        %v1058 = vpop.permute.xlu0 %1057
        %1059 = vrot.lane.b32.xlu0 %v312, 28
        %v1060 = vpop.permute.xlu0 %1059
        %1061 = vrot.lane.b32.xlu0 %v315, 28
        %v1062 = vpop.permute.xlu0 %1061
        %1063 = vrot.lane.b32.xlu0 %v317, 28
        %v1064 = vpop.permute.xlu0 %1063
        %1065 = vrot.lane.b32.xlu0 %v320, 28
        %v1066 = vpop.permute.xlu0 %1065
        %1067 = vrot.lane.b32.xlu0 %v322, 28
        %v1068 = vpop.permute.xlu0 %1067
        %1069 = vrot.lane.b32.xlu0 %v325, 28
        %v1070 = vpop.permute.xlu0 %1069
        %1071 = vrot.lane.b32.xlu0 %v327, 28
        %v1072 = vpop.permute.xlu0 %1071
        %1073 = vrot.lane.b32.xlu0 %v330, 28
        %v1074 = vpop.permute.xlu0 %1073
        %1075 = vrot.lane.b32.xlu0 %v332, 28
        %v1076 = vpop.permute.xlu0 %1075
        %1077 = vrot.lane.b32.xlu0 %v335, 28
        %v1078 = vpop.permute.xlu0 %1077
        %1079 = vrot.lane.b32.xlu0 %v337, 28
        %v1080 = vpop.permute.xlu0 %1079
        %1081 = vrot.lane.b32.xlu0 %v340, 28
        %v1082 = vpop.permute.xlu0 %1081
        %1083 = vrot.lane.b32.xlu0 %v342, 28
        %v1084 = vpop.permute.xlu0 %1083
        %1085 = vrot.lane.b32.xlu0 %v345, 28
        %v1086 = vpop.permute.xlu0 %1085
        %1087 = vrot.lane.b32.xlu0 %v347, 28
        %v1088 = vpop.permute.xlu0 %1087
        %1089 = vrot.lane.b32.xlu0 %v350, 28
        %v1090 = vpop.permute.xlu0 %1089
        %1091 = vrot.lane.b32.xlu0 %v352, 28
        %v1092 = vpop.permute.xlu0 %1091
        %1093 = vrot.lane.b32.xlu0 %v355, 28
        %v1094 = vpop.permute.xlu0 %1093
        %1095 = vrot.lane.b32.xlu0 %v357, 28
        %v1096 = vpop.permute.xlu0 %1095
        %1097 = vrot.lane.b32.xlu0 %v444, 28
        %v1098 = vpop.permute.xlu0 %1097
        %1099 = vrot.lane.b32.xlu0 %v446, 28
        %v1100 = vpop.permute.xlu0 %1099
        %1101 = vrot.lane.b32.xlu0 %v457, 28
        %v1102 = vpop.permute.xlu0 %1101
        %1103 = vrot.lane.b32.xlu0 %v459, 28
        %v1104 = vpop.permute.xlu0 %1103
        %1137 = vrot.lane.b32.xlu0 %v371, 32
        %v1138 = vpop.permute.xlu0 %1137
        %1139 = vrot.lane.b32.xlu0 %v373, 32
        %v1140 = vpop.permute.xlu0 %1139
        %1141 = vrot.lane.b32.xlu0 %v376, 32
        %v1142 = vpop.permute.xlu0 %1141
        %1143 = vrot.lane.b32.xlu0 %v378, 32
        %v1144 = vpop.permute.xlu0 %1143
        %1145 = vrot.lane.b32.xlu0 %v381, 32
        %v1146 = vpop.permute.xlu0 %1145
        %1147 = vrot.lane.b32.xlu0 %v383, 32
        %v1148 = vpop.permute.xlu0 %1147
        %1149 = vrot.lane.b32.xlu0 %v386, 32
        %v1150 = vpop.permute.xlu0 %1149
        %1151 = vrot.lane.b32.xlu0 %v388, 32
        %v1152 = vpop.permute.xlu0 %1151
        %1153 = vrot.lane.b32.xlu0 %v391, 32
        %v1154 = vpop.permute.xlu0 %1153
        %1155 = vrot.lane.b32.xlu0 %v393, 32
        %v1156 = vpop.permute.xlu0 %1155
        %1157 = vrot.lane.b32.xlu0 %v396, 32
        %v1158 = vpop.permute.xlu0 %1157
        %1159 = vrot.lane.b32.xlu0 %v398, 32
        %v1160 = vpop.permute.xlu0 %1159
        %1161 = vrot.lane.b32.xlu0 %v401, 32
        %v1162 = vpop.permute.xlu0 %1161
        %1163 = vrot.lane.b32.xlu0 %v403, 32
        %v1164 = vpop.permute.xlu0 %1163
        %1165 = vrot.lane.b32.xlu0 %v406, 32
        %v1166 = vpop.permute.xlu0 %1165
        %1167 = vrot.lane.b32.xlu0 %v408, 32
        %v1168 = vpop.permute.xlu0 %1167
        %1169 = vrot.lane.b32.xlu0 %v411, 32
        %v1170 = vpop.permute.xlu0 %1169
        %1171 = vrot.lane.b32.xlu0 %v413, 32
        %v1172 = vpop.permute.xlu0 %1171
        %1173 = vrot.lane.b32.xlu0 %v416, 32
        %v1174 = vpop.permute.xlu0 %1173
        %1175 = vrot.lane.b32.xlu0 %v418, 32
        %v1176 = vpop.permute.xlu0 %1175
        %1177 = vrot.lane.b32.xlu0 %v421, 32
        %v1178 = vpop.permute.xlu0 %1177
        %1179 = vrot.lane.b32.xlu0 %v423, 32
        %v1180 = vpop.permute.xlu0 %1179
        %1181 = vrot.lane.b32.xlu0 %v426, 32
        %v1182 = vpop.permute.xlu0 %1181
        %1183 = vrot.lane.b32.xlu0 %v428, 32
        %v1184 = vpop.permute.xlu0 %1183
        %1185 = vrot.lane.b32.xlu0 %v431, 32
        %v1186 = vpop.permute.xlu0 %1185
        %1187 = vrot.lane.b32.xlu0 %v433, 32
        %v1188 = vpop.permute.xlu0 %1187
        %1189 = vrot.lane.b32.xlu0 %v436, 32
        %v1190 = vpop.permute.xlu0 %1189
        %1191 = vrot.lane.b32.xlu0 %v438, 32
        %v1192 = vpop.permute.xlu0 %1191
        %1193 = vrot.lane.b32.xlu0 %v449, 32
        %v1194 = vpop.permute.xlu0 %1193
        %1195 = vrot.lane.b32.xlu0 %v451, 32
        %v1196 = vpop.permute.xlu0 %1195
        %1197 = vrot.lane.b32.xlu0 %v462, 32
        %v1198 = vpop.permute.xlu0 %1197
        %1199 = vrot.lane.b32.xlu0 %v464, 32
        %v1200 = vpop.permute.xlu0 %1199
        %vm1233 = vcmask 31744
        %v1234 = vsel %vm1233, %v169, %v466
        %v1235 = vsel %vm1233, %v170, %v468
        %v1236 = vsel %vm1233, %v172, %v470
        %v1237 = vsel %vm1233, %v173, %v472
        %v1238 = vsel %vm1233, %v175, %v474
        %v1239 = vsel %vm1233, %v176, %v476
        %v1240 = vsel %vm1233, %v178, %v478
        %v1241 = vsel %vm1233, %v179, %v480
        %v1242 = vsel %vm1233, %v181, %v482
        %v1243 = vsel %vm1233, %v182, %v484
        %v1244 = vsel %vm1233, %v184, %v486
        %v1245 = vsel %vm1233, %v185, %v488
        %v1246 = vsel %vm1233, %v187, %v490
        %v1247 = vsel %vm1233, %v188, %v492
        %v1248 = vsel %vm1233, %v190, %v494
        %v1249 = vsel %vm1233, %v191, %v496
        %v1250 = vsel %vm1233, %v193, %v498
        %v1251 = vsel %vm1233, %v194, %v500
        %v1252 = vsel %vm1233, %v196, %v502
        %v1253 = vsel %vm1233, %v197, %v504
        %v1254 = vsel %vm1233, %v199, %v506
        %v1255 = vsel %vm1233, %v200, %v508
        %v1256 = vsel %vm1233, %v202, %v510
        %v1257 = vsel %vm1233, %v203, %v512
        %v1258 = vsel %vm1233, %v205, %v514
        %v1259 = vsel %vm1233, %v206, %v516
        %v1260 = vsel %vm1233, %v208, %v518
        %v1261 = vsel %vm1233, %v209, %v520
        %v1262 = vsel %vm1233, %v211, %v522
        %v1263 = vsel %vm1233, %v212, %v524
        %v1264 = vsel %vm1233, %v214, %v526
        %v1265 = vsel %vm1233, %v215, %v528
        %vm1266 = vcmask 64512
        %v1267 = vsel %vm1266, %v1234, %v562
        %v1268 = vsel %vm1266, %v1235, %v564
        %v1269 = vsel %vm1266, %v1236, %v566
        %v1270 = vsel %vm1266, %v1237, %v568
        %v1271 = vsel %vm1266, %v1238, %v570
        %v1272 = vsel %vm1266, %v1239, %v572
        %v1273 = vsel %vm1266, %v1240, %v574
        %v1274 = vsel %vm1266, %v1241, %v576
        %v1275 = vsel %vm1266, %v1242, %v578
        %v1276 = vsel %vm1266, %v1243, %v580
        %v1277 = vsel %vm1266, %v1244, %v582
        %v1278 = vsel %vm1266, %v1245, %v584
        %v1279 = vsel %vm1266, %v1246, %v586
        %v1280 = vsel %vm1266, %v1247, %v588
        %v1281 = vsel %vm1266, %v1248, %v590
        %v1282 = vsel %vm1266, %v1249, %v592
        %v1283 = vsel %vm1266, %v1250, %v594
        %v1284 = vsel %vm1266, %v1251, %v596
        %v1285 = vsel %vm1266, %v1252, %v598
        %v1286 = vsel %vm1266, %v1253, %v600
        %v1287 = vsel %vm1266, %v1254, %v602
        %v1288 = vsel %vm1266, %v1255, %v604
        %v1289 = vsel %vm1266, %v1256, %v606
        %v1290 = vsel %vm1266, %v1257, %v608
        %v1291 = vsel %vm1266, %v1258, %v610
        %v1292 = vsel %vm1266, %v1259, %v612
        %v1293 = vsel %vm1266, %v1260, %v614
        %v1294 = vsel %vm1266, %v1261, %v616
        %v1295 = vsel %vm1266, %v1262, %v618
        %v1296 = vsel %vm1266, %v1263, %v620
        %v1297 = vsel %vm1266, %v1264, %v622
        %v1298 = vsel %vm1266, %v1265, %v624
        %vm1299 = vcmask 97280
        %v1300 = vsel %vm1299, %v1267, %v658
        %v1301 = vsel %vm1299, %v1268, %v660
        %v1302 = vsel %vm1299, %v1269, %v662
        %v1303 = vsel %vm1299, %v1270, %v664
        %v1304 = vsel %vm1299, %v1271, %v666
        %v1305 = vsel %vm1299, %v1272, %v668
        %v1306 = vsel %vm1299, %v1273, %v670
        %v1307 = vsel %vm1299, %v1274, %v672
        %v1308 = vsel %vm1299, %v1275, %v674
        %v1309 = vsel %vm1299, %v1276, %v676
        %v1310 = vsel %vm1299, %v1277, %v678
        %v1311 = vsel %vm1299, %v1278, %v680
        %v1312 = vsel %vm1299, %v1279, %v682
        %v1313 = vsel %vm1299, %v1280, %v684
        %v1314 = vsel %vm1299, %v1281, %v686
        %v1315 = vsel %vm1299, %v1282, %v688
        %v1316 = vsel %vm1299, %v1283, %v690
        %v1317 = vsel %vm1299, %v1284, %v692
        %v1318 = vsel %vm1299, %v1285, %v694
        %v1319 = vsel %vm1299, %v1286, %v696
        %v1320 = vsel %vm1299, %v1287, %v698
        %v1321 = vsel %vm1299, %v1288, %v700
        %v1322 = vsel %vm1299, %v1289, %v702
        %v1323 = vsel %vm1299, %v1290, %v704
        %v1324 = vsel %vm1299, %v1291, %v706
        %v1325 = vsel %vm1299, %v1292, %v708
        %v1326 = vsel %vm1299, %v1293, %v710
        %v1327 = vsel %vm1299, %v1294, %v712
        %v1328 = vsel %vm1299, %v1295, %v714
        %v1329 = vsel %vm1299, %v1296, %v716
        %v1330 = vsel %vm1299, %v1297, %v718
        %v1331 = vsel %vm1299, %v1298, %v720
        %vm1332 = vcmask 130048
        %v1333 = vsel %vm1332, %v1300, %v754
        %v1334 = vsel %vm1332, %v1301, %v756
        %v1335 = vsel %vm1332, %v1302, %v758
        %v1336 = vsel %vm1332, %v1303, %v760
        %v1337 = vsel %vm1332, %v1304, %v762
        %v1338 = vsel %vm1332, %v1305, %v764
        %v1339 = vsel %vm1332, %v1306, %v766
        %v1340 = vsel %vm1332, %v1307, %v768
        %v1341 = vsel %vm1332, %v1308, %v770
        %v1342 = vsel %vm1332, %v1309, %v772
        %v1343 = vsel %vm1332, %v1310, %v774
        %v1344 = vsel %vm1332, %v1311, %v776
        %v1345 = vsel %vm1332, %v1312, %v778
        %v1346 = vsel %vm1332, %v1313, %v780
        %v1347 = vsel %vm1332, %v1314, %v782
        %v1348 = vsel %vm1332, %v1315, %v784
        %v1349 = vsel %vm1332, %v1316, %v786
        %v1350 = vsel %vm1332, %v1317, %v788
        %v1351 = vsel %vm1332, %v1318, %v790
        %v1352 = vsel %vm1332, %v1319, %v792
        %v1353 = vsel %vm1332, %v1320, %v794
        %v1354 = vsel %vm1332, %v1321, %v796
        %v1355 = vsel %vm1332, %v1322, %v798
        %v1356 = vsel %vm1332, %v1323, %v800
        %v1357 = vsel %vm1332, %v1324, %v802
        %v1358 = vsel %vm1332, %v1325, %v804
        %v1359 = vsel %vm1332, %v1326, %v806
        %v1360 = vsel %vm1332, %v1327, %v808
        %v1361 = vsel %vm1332, %v1328, %v810
        %v1362 = vsel %vm1332, %v1329, %v812
        %v1363 = vsel %vm1332, %v1330, %v814
        %v1364 = vsel %vm1332, %v1331, %v816
        %vm1365 = vcmask 162816
        %v1366 = vsel %vm1365, %v1333, %v850
        %v1367 = vsel %vm1365, %v1334, %v852
        %v1368 = vsel %vm1365, %v1335, %v854
        %v1369 = vsel %vm1365, %v1336, %v856
        %v1370 = vsel %vm1365, %v1337, %v858
        %v1371 = vsel %vm1365, %v1338, %v860
        %v1372 = vsel %vm1365, %v1339, %v862
        %v1373 = vsel %vm1365, %v1340, %v864
        %v1374 = vsel %vm1365, %v1341, %v866
        %v1375 = vsel %vm1365, %v1342, %v868
        %v1376 = vsel %vm1365, %v1343, %v870
        %v1377 = vsel %vm1365, %v1344, %v872
        %v1378 = vsel %vm1365, %v1345, %v874
        %v1379 = vsel %vm1365, %v1346, %v876
        %v1380 = vsel %vm1365, %v1347, %v878
        %v1381 = vsel %vm1365, %v1348, %v880
        %v1382 = vsel %vm1365, %v1349, %v882
        %v1383 = vsel %vm1365, %v1350, %v884
        %v1384 = vsel %vm1365, %v1351, %v886
        %v1385 = vsel %vm1365, %v1352, %v888
        %v1386 = vsel %vm1365, %v1353, %v890
        %v1387 = vsel %vm1365, %v1354, %v892
        %v1388 = vsel %vm1365, %v1355, %v894
        %v1389 = vsel %vm1365, %v1356, %v896
        %v1390 = vsel %vm1365, %v1357, %v898
        %v1391 = vsel %vm1365, %v1358, %v900
        %v1392 = vsel %vm1365, %v1359, %v902
        %v1393 = vsel %vm1365, %v1360, %v904
        %v1394 = vsel %vm1365, %v1361, %v906
        %v1395 = vsel %vm1365, %v1362, %v908
        %v1396 = vsel %vm1365, %v1363, %v910
        %v1397 = vsel %vm1365, %v1364, %v912
        %vm1398 = vcmask 195584
        %v1399 = vsel %vm1398, %v1366, %v946
        %v1400 = vsel %vm1398, %v1367, %v948
        %v1401 = vsel %vm1398, %v1368, %v950
        %v1402 = vsel %vm1398, %v1369, %v952
        %v1403 = vsel %vm1398, %v1370, %v954
        %v1404 = vsel %vm1398, %v1371, %v956
        %v1405 = vsel %vm1398, %v1372, %v958
        %v1406 = vsel %vm1398, %v1373, %v960
        %v1407 = vsel %vm1398, %v1374, %v962
        %v1408 = vsel %vm1398, %v1375, %v964
        %v1409 = vsel %vm1398, %v1376, %v966
        %v1410 = vsel %vm1398, %v1377, %v968
        %v1411 = vsel %vm1398, %v1378, %v970
        %v1412 = vsel %vm1398, %v1379, %v972
        %v1413 = vsel %vm1398, %v1380, %v974
        %v1414 = vsel %vm1398, %v1381, %v976
        %v1415 = vsel %vm1398, %v1382, %v978
        %v1416 = vsel %vm1398, %v1383, %v980
        %v1417 = vsel %vm1398, %v1384, %v982
        %v1418 = vsel %vm1398, %v1385, %v984
        %v1419 = vsel %vm1398, %v1386, %v986
        %v1420 = vsel %vm1398, %v1387, %v988
        %v1421 = vsel %vm1398, %v1388, %v990
        %v1422 = vsel %vm1398, %v1389, %v992
        %v1423 = vsel %vm1398, %v1390, %v994
        %v1424 = vsel %vm1398, %v1391, %v996
        %v1425 = vsel %vm1398, %v1392, %v998
        %v1426 = vsel %vm1398, %v1393, %v1000
        %v1427 = vsel %vm1398, %v1394, %v1002
        %v1428 = vsel %vm1398, %v1395, %v1004
        %v1429 = vsel %vm1398, %v1396, %v1006
        %v1430 = vsel %vm1398, %v1397, %v1008
        %vm1431 = vcmask 228352
        %v1432 = vsel %vm1431, %v1399, %v1042
        %v1433 = vsel %vm1431, %v1400, %v1044
        %v1434 = vsel %vm1431, %v1401, %v1046
        %v1435 = vsel %vm1431, %v1402, %v1048
        %v1436 = vsel %vm1431, %v1403, %v1050
        %v1437 = vsel %vm1431, %v1404, %v1052
        %v1438 = vsel %vm1431, %v1405, %v1054
        %v1439 = vsel %vm1431, %v1406, %v1056
        %v1440 = vsel %vm1431, %v1407, %v1058
        %v1441 = vsel %vm1431, %v1408, %v1060
        %v1442 = vsel %vm1431, %v1409, %v1062
        %v1443 = vsel %vm1431, %v1410, %v1064
        %v1444 = vsel %vm1431, %v1411, %v1066
        %v1445 = vsel %vm1431, %v1412, %v1068
        %v1446 = vsel %vm1431, %v1413, %v1070
        %v1447 = vsel %vm1431, %v1414, %v1072
        %v1448 = vsel %vm1431, %v1415, %v1074
        %v1449 = vsel %vm1431, %v1416, %v1076
        %v1450 = vsel %vm1431, %v1417, %v1078
        %v1451 = vsel %vm1431, %v1418, %v1080
        %v1452 = vsel %vm1431, %v1419, %v1082
        %v1453 = vsel %vm1431, %v1420, %v1084
        %v1454 = vsel %vm1431, %v1421, %v1086
        %v1455 = vsel %vm1431, %v1422, %v1088
        %v1456 = vsel %vm1431, %v1423, %v1090
        %v1457 = vsel %vm1431, %v1424, %v1092
        %v1458 = vsel %vm1431, %v1425, %v1094
        %v1459 = vsel %vm1431, %v1426, %v1096
        %v1460 = vsel %vm1431, %v1427, %v1098
        %v1461 = vsel %vm1431, %v1428, %v1100
        %v1462 = vsel %vm1431, %v1429, %v1102
        %v1463 = vsel %vm1431, %v1430, %v1104
        %vm1464 = vcmask 261120
        %v1465 = vsel %vm1464, %v1432, %v1138
        %v1466 = vsel %vm1464, %v1433, %v1140
        %v1467 = vsel %vm1464, %v1434, %v1142
        %v1468 = vsel %vm1464, %v1435, %v1144
        %v1469 = vsel %vm1464, %v1436, %v1146
        %v1470 = vsel %vm1464, %v1437, %v1148
        %v1471 = vsel %vm1464, %v1438, %v1150
        %v1472 = vsel %vm1464, %v1439, %v1152
        %v1473 = vsel %vm1464, %v1440, %v1154
        %v1474 = vsel %vm1464, %v1441, %v1156
        %v1475 = vsel %vm1464, %v1442, %v1158
        %v1476 = vsel %vm1464, %v1443, %v1160
        %v1477 = vsel %vm1464, %v1444, %v1162
        %v1478 = vsel %vm1464, %v1445, %v1164
        %v1479 = vsel %vm1464, %v1446, %v1166
        %v1480 = vsel %vm1464, %v1447, %v1168
        %v1481 = vsel %vm1464, %v1448, %v1170
        %v1482 = vsel %vm1464, %v1449, %v1172
        %v1483 = vsel %vm1464, %v1450, %v1174
        %v1484 = vsel %vm1464, %v1451, %v1176
        %v1485 = vsel %vm1464, %v1452, %v1178
        %v1486 = vsel %vm1464, %v1453, %v1180
        %v1487 = vsel %vm1464, %v1454, %v1182
        %v1488 = vsel %vm1464, %v1455, %v1184
        %v1489 = vsel %vm1464, %v1456, %v1186
        %v1490 = vsel %vm1464, %v1457, %v1188
        %v1491 = vsel %vm1464, %v1458, %v1190
        %v1492 = vsel %vm1464, %v1459, %v1192
        %v1493 = vsel %vm1464, %v1460, %v1194
        %v1494 = vsel %vm1464, %v1461, %v1196
        %v1495 = vsel %vm1464, %v1462, %v1198
        %v1496 = vsel %vm1464, %v1463, %v1200
        %v1498 = vlaneseq
        %v1499 = vshrl.u32 %v1498, 7
        %v1500 = vsub.s32 0, %v1499
        %v1501 = vrot.slane %v228, %v1500
        %vm1503 = vcmask 293888
        %v1505 = vsel %vm1503, %v1465, 0
        %v1508 = vsel %vm1503, %v1466, 0
        %v1511 = vsel %vm1503, %v1467, 0
        %v1514 = vsel %vm1503, %v1468, 0
        %v1517 = vsel %vm1503, %v1469, 0
        %v1520 = vsel %vm1503, %v1470, 0
        %v1523 = vsel %vm1503, %v1471, 0
        %v1526 = vsel %vm1503, %v1472, 0
        %v1529 = vsel %vm1503, %v1473, 0
        %v1532 = vsel %vm1503, %v1474, 0
        %v1535 = vsel %vm1503, %v1475, 0
        %v1538 = vsel %vm1503, %v1476, 0
        %v1541 = vsel %vm1503, %v1477, 0
        %v1544 = vsel %vm1503, %v1478, 0
        %v1547 = vsel %vm1503, %v1479, 0
        %v1550 = vsel %vm1503, %v1480, 0
        %v1553 = vsel %vm1503, %v1481, 0
        %v1556 = vsel %vm1503, %v1482, 0
        %v1559 = vsel %vm1503, %v1483, 0
        %v1562 = vsel %vm1503, %v1484, 0
        %v1565 = vsel %vm1503, %v1485, 0
        %v1568 = vsel %vm1503, %v1486, 0
        %v1571 = vsel %vm1503, %v1487, 0
        %v1574 = vsel %vm1503, %v1488, 0
        %v1577 = vsel %vm1503, %v1489, 0
        %v1580 = vsel %vm1503, %v1490, 0
        %v1583 = vsel %vm1503, %v1491, 0
        %v1586 = vsel %vm1503, %v1492, 0
        %v1589 = vsel %vm1503, %v1493, 0
        %v1592 = vsel %vm1503, %v1494, 0
        %v1595 = vsel %vm1503, %v1495, 0
        %v1598 = vsel %vm1503, %v1496, 0
        %vm1600 = vcmask 1043456
        %v1602 = vsel %vm1600, %v227, 0
        %1604 = vmatprep.subr.mxu0 0.0
        %1605 = vmatpush1.msra.mxu0 0.0
        %1606 = vmatprep.subr.mxu0 0.0
        %1607 = vmatpush1.msra.mxu0 0.0
        %1608 = vmatprep.subr.mxu0 0.0
        %1609 = vmatpush1.msra.mxu0 0.0
        %1610 = vmatprep.subr.mxu0 0.0
        %1611 = vmatpush1.msra.mxu0 0.0
        %1612 = vmatprep.subr.mxu0 0.0
        %1613 = vmatpush1.msra.mxu0 0.0
        %1614 = vmatprep.subr.mxu0 0.0
        %1615 = vmatpush1.msra.mxu0 0.0
        %1616 = vmatprep.subr.mxu0 0.0
        %1617 = vmatpush1.msra.mxu0 0.0
        %1618 = vmatprep.subr.mxu0 0.0
        %1619 = vmatpush1.msra.mxu0 0.0
        %1620 = vmatprep.subr.mxu0 0.0
        %1621 = vmatpush1.msra.mxu0 0.0
        %1622 = vmatprep.subr.mxu0 0.0
        %1623 = vmatpush1.msra.mxu0 0.0
        %1624 = vmatprep.subr.mxu0 0.0
        %1625 = vmatpush1.msra.mxu0 0.0
        %1626 = vmatprep.subr.mxu0 0.0
        %1627 = vmatpush1.msra.mxu0 %v1602
        %1628 = vmatprep.subr.mxu0 0.0
        %1629 = vmatpush1.msra.mxu0 %v226
        %1630 = vmatprep.subr.mxu0 0.0
        %1631 = vmatpush1.msra.mxu0 %v225
        %1632 = vmatprep.subr.mxu0 0.0
        %1633 = vmatpush1.msra.mxu0 %v224
        %1634 = vmatprep.subr.mxu0 0.0
        %1635 = vmatpush1.msra.mxu0 %v223
        %1636 = vmatprep.subr.mxu0 0.0
        %1637 = vmatpush2.msra.mxu0 0.0
        %1638 = vmatprep.subr.mxu0 0.0
        %1639 = vmatpush2.msra.mxu0 0.0
        %1640 = vmatprep.subr.mxu0 0.0
        %1641 = vmatpush2.msra.mxu0 0.0
        %1642 = vmatprep.subr.mxu0 0.0
        %1643 = vmatpush2.msra.mxu0 0.0
        %1644 = vmatprep.subr.mxu0 0.0
        %1645 = vmatpush2.msra.mxu0 0.0
        %1646 = vmatprep.subr.mxu0 0.0
        %1647 = vmatpush2.msra.mxu0 0.0
        %1648 = vmatprep.subr.mxu0 0.0
        %1649 = vmatpush2.msra.mxu0 0.0
        %1650 = vmatprep.subr.mxu0 0.0
        %1651 = vmatpush2.msra.mxu0 0.0
        %1652 = vmatprep.subr.mxu0 0.0
        %1653 = vmatpush2.msra.mxu0 0.0
        %1654 = vmatprep.subr.mxu0 0.0
        %1655 = vmatpush2.msra.mxu0 0.0
        %1656 = vmatprep.subr.mxu0 0.0
        %1657 = vmatpush2.msra.mxu0 0.0
        %1658 = vmatprep.subr.mxu0 0.0
        %1659 = vmatpush2.msra.mxu0 0.0
        %1660 = vmatprep.subr.mxu0 0.0
        %1661 = vmatpush2.msra.mxu0 0.0
        %1662 = vmatprep.subr.mxu0 0.0
        %1663 = vmatpush2.msra.mxu0 0.0
        %1664 = vmatprep.subr.mxu0 0.0
        %1665 = vmatpush2.msra.mxu0 0.0
        %1666 = vmatprep.subr.mxu0 0.0
        %1667 = vmatpush2.msra.mxu0 0.0
        %1668 = vmatprep.mubr.f32.mxu0 0.0
        %1669 = vmatmul.mubr.f32.gmra.mxu0 %v1505
        %v1670 = vpop.f32.mrf.mxu0
        %v1671 = vadd.f32 %v1501, %v1670
        %v1672 = vpop.f32.mrf.mxu0
        %1673 = vmatprep.mubr.f32.mxu0 0.0
        %1674 = vmatmul.mubr.f32.gmra.mxu0 %v1508
        %v1675 = vpop.f32.mrf.mxu0
        %v1676 = vadd.f32 %v1501, %v1675
        %v1677 = vpop.f32.mrf.mxu0
        %1678 = vmatprep.mubr.f32.mxu0 0.0
        %1679 = vmatmul.mubr.f32.gmra.mxu0 %v1511
        %v1680 = vpop.f32.mrf.mxu0
        %v1681 = vadd.f32 %v1501, %v1680
        %v1682 = vpop.f32.mrf.mxu0
        %1683 = vmatprep.mubr.f32.mxu0 0.0
        %1684 = vmatmul.mubr.f32.gmra.mxu0 %v1514
        %v1685 = vpop.f32.mrf.mxu0
        %v1686 = vadd.f32 %v1501, %v1685
        %v1687 = vpop.f32.mrf.mxu0
        %1688 = vmatprep.mubr.f32.mxu0 0.0
        %1689 = vmatmul.mubr.f32.gmra.mxu0 %v1517
        %v1690 = vpop.f32.mrf.mxu0
        %v1691 = vadd.f32 %v1501, %v1690
        %v1692 = vpop.f32.mrf.mxu0
        %1693 = vmatprep.mubr.f32.mxu0 0.0
        %1694 = vmatmul.mubr.f32.gmra.mxu0 %v1520
        %v1695 = vpop.f32.mrf.mxu0
        %v1696 = vadd.f32 %v1501, %v1695
        %v1697 = vpop.f32.mrf.mxu0
        %1698 = vmatprep.mubr.f32.mxu0 0.0
        %1699 = vmatmul.mubr.f32.gmra.mxu0 %v1523
        %v1700 = vpop.f32.mrf.mxu0
        %v1701 = vadd.f32 %v1501, %v1700
        %v1702 = vpop.f32.mrf.mxu0
        %1703 = vmatprep.mubr.f32.mxu0 0.0
        %1704 = vmatmul.mubr.f32.gmra.mxu0 %v1526
        %v1705 = vpop.f32.mrf.mxu0
        %v1706 = vadd.f32 %v1501, %v1705
        %v1707 = vpop.f32.mrf.mxu0
        %1708 = vmatprep.mubr.f32.mxu0 0.0
        %1709 = vmatmul.mubr.f32.gmra.mxu0 %v1529
        %v1710 = vpop.f32.mrf.mxu0
        %v1711 = vadd.f32 %v1501, %v1710
        %v1712 = vpop.f32.mrf.mxu0
        %1713 = vmatprep.mubr.f32.mxu0 0.0
        %1714 = vmatmul.mubr.f32.gmra.mxu0 %v1532
        %v1715 = vpop.f32.mrf.mxu0
        %v1716 = vadd.f32 %v1501, %v1715
        %v1717 = vpop.f32.mrf.mxu0
        %1718 = vmatprep.mubr.f32.mxu0 0.0
        %1719 = vmatmul.mubr.f32.gmra.mxu0 %v1535
        %v1720 = vpop.f32.mrf.mxu0
        %v1721 = vadd.f32 %v1501, %v1720
        %v1722 = vpop.f32.mrf.mxu0
        %1723 = vmatprep.mubr.f32.mxu0 0.0
        %1724 = vmatmul.mubr.f32.gmra.mxu0 %v1538
        %v1725 = vpop.f32.mrf.mxu0
        %v1726 = vadd.f32 %v1501, %v1725
        %v1727 = vpop.f32.mrf.mxu0
        %1728 = vmatprep.mubr.f32.mxu0 0.0
        %1729 = vmatmul.mubr.f32.gmra.mxu0 %v1541
        %v1730 = vpop.f32.mrf.mxu0
        %v1731 = vadd.f32 %v1501, %v1730
        %v1732 = vpop.f32.mrf.mxu0
        %1733 = vmatprep.mubr.f32.mxu0 0.0
        %1734 = vmatmul.mubr.f32.gmra.mxu0 %v1544
        %v1735 = vpop.f32.mrf.mxu0
        %v1736 = vadd.f32 %v1501, %v1735
        %v1737 = vpop.f32.mrf.mxu0
        %1738 = vmatprep.mubr.f32.mxu0 0.0
        %1739 = vmatmul.mubr.f32.gmra.mxu0 %v1547
        %v1740 = vpop.f32.mrf.mxu0
        %v1741 = vadd.f32 %v1501, %v1740
        %v1742 = vpop.f32.mrf.mxu0
        %1743 = vmatprep.mubr.f32.mxu0 0.0
        %1744 = vmatmul.mubr.f32.gmra.mxu0 %v1550
        %v1745 = vpop.f32.mrf.mxu0
        %v1746 = vadd.f32 %v1501, %v1745
        %v1747 = vpop.f32.mrf.mxu0
        %1748 = vmatprep.mubr.f32.mxu0 0.0
        %1749 = vmatmul.mubr.f32.gmra.mxu0 %v1553
        %v1750 = vpop.f32.mrf.mxu0
        %v1751 = vadd.f32 %v1501, %v1750
        %v1752 = vpop.f32.mrf.mxu0
        %1753 = vmatprep.mubr.f32.mxu0 0.0
        %1754 = vmatmul.mubr.f32.gmra.mxu0 %v1556
        %v1755 = vpop.f32.mrf.mxu0
        %v1756 = vadd.f32 %v1501, %v1755
        %v1757 = vpop.f32.mrf.mxu0
        %1758 = vmatprep.mubr.f32.mxu0 0.0
        %1759 = vmatmul.mubr.f32.gmra.mxu0 %v1559
        %v1760 = vpop.f32.mrf.mxu0
        %v1761 = vadd.f32 %v1501, %v1760
        %v1762 = vpop.f32.mrf.mxu0
        %1763 = vmatprep.mubr.f32.mxu0 0.0
        %1764 = vmatmul.mubr.f32.gmra.mxu0 %v1562
        %v1765 = vpop.f32.mrf.mxu0
        %v1766 = vadd.f32 %v1501, %v1765
        %v1767 = vpop.f32.mrf.mxu0
        %1768 = vmatprep.mubr.f32.mxu0 0.0
        %1769 = vmatmul.mubr.f32.gmra.mxu0 %v1565
        %v1770 = vpop.f32.mrf.mxu0
        %v1771 = vadd.f32 %v1501, %v1770
        %v1772 = vpop.f32.mrf.mxu0
        %1773 = vmatprep.mubr.f32.mxu0 0.0
        %1774 = vmatmul.mubr.f32.gmra.mxu0 %v1568
        %v1775 = vpop.f32.mrf.mxu0
        %v1776 = vadd.f32 %v1501, %v1775
        %v1777 = vpop.f32.mrf.mxu0
        %1778 = vmatprep.mubr.f32.mxu0 0.0
        %1779 = vmatmul.mubr.f32.gmra.mxu0 %v1571
        %v1780 = vpop.f32.mrf.mxu0
        %v1781 = vadd.f32 %v1501, %v1780
        %v1782 = vpop.f32.mrf.mxu0
        %1783 = vmatprep.mubr.f32.mxu0 0.0
        %1784 = vmatmul.mubr.f32.gmra.mxu0 %v1574
        %v1785 = vpop.f32.mrf.mxu0
        %v1786 = vadd.f32 %v1501, %v1785
        %v1787 = vpop.f32.mrf.mxu0
        %1788 = vmatprep.mubr.f32.mxu0 0.0
        %1789 = vmatmul.mubr.f32.gmra.mxu0 %v1577
        %v1790 = vpop.f32.mrf.mxu0
        %v1791 = vadd.f32 %v1501, %v1790
        %v1792 = vpop.f32.mrf.mxu0
        %1793 = vmatprep.mubr.f32.mxu0 0.0
        %1794 = vmatmul.mubr.f32.gmra.mxu0 %v1580
        %v1795 = vpop.f32.mrf.mxu0
        %v1796 = vadd.f32 %v1501, %v1795
        %v1797 = vpop.f32.mrf.mxu0
        %1798 = vmatprep.mubr.f32.mxu0 0.0
        %1799 = vmatmul.mubr.f32.gmra.mxu0 %v1583
        %v1800 = vpop.f32.mrf.mxu0
        %v1801 = vadd.f32 %v1501, %v1800
        %v1802 = vpop.f32.mrf.mxu0
        %1803 = vmatprep.mubr.f32.mxu0 0.0
        %1804 = vmatmul.mubr.f32.gmra.mxu0 %v1586
        %v1805 = vpop.f32.mrf.mxu0
        %v1806 = vadd.f32 %v1501, %v1805
        %v1807 = vpop.f32.mrf.mxu0
        %1808 = vmatprep.mubr.f32.mxu0 0.0
        %1809 = vmatmul.mubr.f32.gmra.mxu0 %v1589
        %v1810 = vpop.f32.mrf.mxu0
        %v1811 = vadd.f32 %v1501, %v1810
        %v1812 = vpop.f32.mrf.mxu0
        %1813 = vmatprep.mubr.f32.mxu0 0.0
        %1814 = vmatmul.mubr.f32.gmra.mxu0 %v1592
        %v1815 = vpop.f32.mrf.mxu0
        %v1816 = vadd.f32 %v1501, %v1815
        %v1817 = vpop.f32.mrf.mxu0
        %1818 = vmatprep.mubr.f32.mxu0 0.0
        %1819 = vmatmul.mubr.f32.gmra.mxu0 %v1595
        %v1820 = vpop.f32.mrf.mxu0
        %v1821 = vadd.f32 %v1501, %v1820
        %v1822 = vpop.f32.mrf.mxu0
        %1823 = vmatprep.mubr.f32.mxu0 0.0
        %1824 = vmatmul.mubr.f32.gmra.mxu0 %v1598
        %v1825 = vpop.f32.mrf.mxu0
        %v1826 = vadd.f32 %v1501, %v1825
        %v1827 = vpop.f32.mrf.mxu0
        %1828 = vdwg.mxu0
        %v1829 = vmax.f32 %v1671, 0.0
        %v1830 = vmax.f32 %v1676, 0.0
        %v1831 = vmax.f32 %v1681, 0.0
        %v1832 = vmax.f32 %v1686, 0.0
        %v1833 = vmax.f32 %v1691, 0.0
        %v1834 = vmax.f32 %v1696, 0.0
        %v1835 = vmax.f32 %v1701, 0.0
        %v1836 = vmax.f32 %v1706, 0.0
        %v1837 = vmax.f32 %v1711, 0.0
        %v1838 = vmax.f32 %v1716, 0.0
        %v1839 = vmax.f32 %v1721, 0.0
        %v1840 = vmax.f32 %v1726, 0.0
        %v1841 = vmax.f32 %v1731, 0.0
        %v1842 = vmax.f32 %v1736, 0.0
        %v1843 = vmax.f32 %v1741, 0.0
        %v1844 = vmax.f32 %v1746, 0.0
        %v1845 = vmax.f32 %v1751, 0.0
        %v1846 = vmax.f32 %v1756, 0.0
        %v1847 = vmax.f32 %v1761, 0.0
        %v1848 = vmax.f32 %v1766, 0.0
        %v1849 = vmax.f32 %v1771, 0.0
        %v1850 = vmax.f32 %v1776, 0.0
        %v1851 = vmax.f32 %v1781, 0.0
        %v1852 = vmax.f32 %v1786, 0.0
        %v1853 = vmax.f32 %v1791, 0.0
        %v1854 = vmax.f32 %v1796, 0.0
        %v1855 = vmax.f32 %v1801, 0.0
        %v1856 = vmax.f32 %v1806, 0.0
        %v1857 = vmax.f32 %v1811, 0.0
        %v1858 = vmax.f32 %v1816, 0.0
        %v1859 = vmax.f32 %v1821, 0.0
        %v1860 = vmax.f32 %v1826, 0.0
        %1861 = vst [vmem:[%s163] sm:$0xff] %v1829
        %1862 = vst [vmem:[%s163 + $0x8] sm:$0xff] %v1830
        %1863 = vst [vmem:[%s163 + $0x10] sm:$0xff] %v1831
        %1864 = vst [vmem:[%s163 + $0x18] sm:$0xff] %v1832
        %1865 = vst [vmem:[%s163 + $0x20] sm:$0xff] %v1833
        %1866 = vst [vmem:[%s163 + $0x28] sm:$0xff] %v1834
        %1867 = vst [vmem:[%s163 + $0x30] sm:$0xff] %v1835
        %1868 = vst [vmem:[%s163 + $0x38] sm:$0xff] %v1836
        %1869 = vst [vmem:[%s163 + $0x40] sm:$0xff] %v1837
        %1870 = vst [vmem:[%s163 + $0x48] sm:$0xff] %v1838
        %1871 = vst [vmem:[%s163 + $0x50] sm:$0xff] %v1839
        %1872 = vst [vmem:[%s163 + $0x58] sm:$0xff] %v1840
        %1873 = vst [vmem:[%s163 + $0x60] sm:$0xff] %v1841
        %1874 = vst [vmem:[%s163 + $0x68] sm:$0xff] %v1842
        %1875 = vst [vmem:[%s163 + $0x70] sm:$0xff] %v1843
        %1876 = vst [vmem:[%s163 + $0x78] sm:$0xff] %v1844
        %1877 = vst [vmem:[%s163 + $0x80] sm:$0xff] %v1845
        %1878 = vst [vmem:[%s163 + $0x88] sm:$0xff] %v1846
        %1879 = vst [vmem:[%s163 + $0x90] sm:$0xff] %v1847
        %1880 = vst [vmem:[%s163 + $0x98] sm:$0xff] %v1848
        %1881 = vst [vmem:[%s163 + $0xa0] sm:$0xff] %v1849
        %1882 = vst [vmem:[%s163 + $0xa8] sm:$0xff] %v1850
        %1883 = vst [vmem:[%s163 + $0xb0] sm:$0xff] %v1851
        %1884 = vst [vmem:[%s163 + $0xb8] sm:$0xff] %v1852
        %1885 = vst [vmem:[%s163 + $0xc0] sm:$0xff] %v1853
        %1886 = vst [vmem:[%s163 + $0xc8] sm:$0xff] %v1854
        %1887 = vst [vmem:[%s163 + $0xd0] sm:$0xff] %v1855
        %1888 = vst [vmem:[%s163 + $0xd8] sm:$0xff] %v1856
        %1889 = vst [vmem:[%s163 + $0xe0] sm:$0xff] %v1857
        %1890 = vst [vmem:[%s163 + $0xe8] sm:$0xff] %v1858
        %1891 = vst [vmem:[%s163 + $0xf0] sm:$0xff] %v1859
        %1892 = vst [vmem:[%s163 + $0xf8] sm:$0xff] %v1860
        %s1893 = sand.u32 %s93, 1
        %s1894 = scalar_lea.sflag [#allocation4], %s1893
        %s1895 = sand.u32 %s93, 1
        %s1896 = smul.addr %s1895, 256
        %s1897 = scalar_lea.vmem [#allocation3], %s1896
        // Predicated region
        $region33: #{tpu_custom_call.1} parent=31 // pred_check
          %p1898 = pneg %p103
        $region34: #{tpu_custom_call.1} parent=31 // pred_check_branch
          %1900 = sbr.rel (%p1898) target = $region36
        $region35: #{tpu_custom_call.1} parent=31 // pred_region
          %s1902 = ssub.s32 4096, 4096
          %1903 = vsyncadd %s1894, %s1902
          %s1904 = smul.addr %s17, 32
          %s1905 = smul.addr %s1904, 128
          %s1906 = scalar_lea.hbm %s3, %s1905
          %s1907 = sshll.u32 %s1897, 4
          %s1908 = int_to_ptr.vmem [resolvable:$true] %s1907
          %1913 = dma.vmem_to_hbm [thread:$0]  %s1908, 4096, %s1906, %s1894, 128, 128, 8
        $region36: #{tpu_custom_call.1} parent=31 // pred_fallthru
          _
      $region32: #{tpu_custom_call.1} parent=5 // pred_fallthru
        _
      %p1914 = scmp.le.s32.totalorder 2, %s12
      // Predicated region
      $region37: #{tpu_custom_call.1} parent=5 // pred_check
        %p1915 = pneg %p1914
      $region38: #{tpu_custom_call.1} parent=5 // pred_check_branch
        %1917 = sbr.rel (%p1915) target = $region40
      $region39: #{tpu_custom_call.1} parent=5 // pred_region
        %s1918 = ssub.s32 %s12, 2
        // Predicated region
        $region41: #{tpu_custom_call.1} parent=39 // pred_check
          %p1919 = pneg %p109
        $region42: #{tpu_custom_call.1} parent=39 // pred_check_branch
          %1921 = sbr.rel (%p1919) target = $region44
        $region43: #{tpu_custom_call.1} parent=39 // pred_region
          %s1922 = sand.u32 %s94, 1
          %s1923 = scalar_lea.sflag [#allocation4], %s1922
          %s1924 = sand.u32 %s94, 1
          %s1925 = smul.addr %s1924, 256
          %s1926 = scalar_lea.vmem [#allocation3], %s1925
          %1927 = dma.done %s1923, 4096
        $region44: #{tpu_custom_call.1} parent=39 // pred_fallthru
          _
      $region40: #{tpu_custom_call.1} parent=5 // pred_fallthru
        _
    $region6: #{tpu_custom_call.1} parent=1 // loop_footer
      %s16 = sadd.s32 1, %s12
    $region7: #{tpu_custom_call.1} parent=1 // loop_footer_branch
      %11 = sbr.rel target = $region3
    $region8: #{tpu_custom_call.1} parent=1 // loop_exit
      _
    %1928 = vsyncpa [#allocation4], 1
    %s1929 = scalar_lea.sflag [#allocation4], 1
    %1930 = vsyncpa %s1929, 1

</llo_original>
